<compile_context>
chip_gen: v6e
topology: v6e:2x2x1
jax: 0.10.0
libtpu: 0.0.40
codegen_flags: <defaults>
</compile_context>

<pallas_src>
import functools

import jax
import jax.numpy as jnp
from jax.experimental import pallas as pl
from jax.experimental.pallas import tpu as pltpu


def _ceil8(n):
    return (n + 7) // 8 * 8


# -----------------------------------------------------------------------------
# Fused kernel: [layer-0 LSTM -> layer-1 LSTM -> ReLU -> FC] in one pallas_call
# -----------------------------------------------------------------------------
def _make_fused_kernel(T, B, D, H, L, O, row_meta):
    """Builds the kernel body for a fixed (T, B, D, H, L, O) and static
    wpack row offsets `row_meta` = [(wih_start, in_dim, whh_start), ...]."""
    G = 4 * H

    def kernel(x_ref, wpack_ref, bpack_ref, h0_ref, c0_ref,
               out_ref, hN_ref, cN_ref, xp_sc, y_sc):
        cdt = wpack_ref.dtype          # matmul operand dtype (f32 or bf16)

        # flattened (T*B, D) view of the time-major input (layout-preserving)
        layer_in_flat = x_ref[...].reshape(T * B, D)

        h_last = None
        for l in range(L):
            wih_start, in_dim, whh_start = row_meta[l]
            # static, 8-row-aligned slices of the packed weight array
            wih_t = wpack_ref[wih_start:wih_start + in_dim, :]   # (in, 4H)
            whh_t = wpack_ref[whh_start:whh_start + H, :]        # (H,  4H)
            b_l = bpack_ref[l:l + 1, :]                          # (1,  4H) f32

            # ---- hoisted input projection: ONE matmul per layer -------------
            xp_sc[...] = (jnp.dot(layer_in_flat.astype(cdt), wih_t,
                                  preferred_element_type=jnp.float32)
                          + b_l).reshape(T, B, G)

            last_layer = (l == L - 1)

            def body(t, carry, whh=whh_t, store=not last_layer):
                h, c = carry
                # gates = (x_t @ W_ih^T + b) + h @ W_hh^T   (f32 accumulation)
                gates = xp_sc[t] + jnp.dot(h.astype(cdt), whh,
                                           preferred_element_type=jnp.float32)
                # SINGLE EUP pass over the whole (B, 4H) block; the g columns
                # were pre-scaled by 2, so tanh(g) == 2*sigmoid(2g) - 1 (VPU).
                sg = jax.nn.sigmoid(gates)
                i = sg[:, 0 * H:1 * H]
                f = sg[:, 1 * H:2 * H]
                g = 2.0 * sg[:, 2 * H:3 * H] - 1.0
                o = sg[:, 3 * H:4 * H]
                c_new = f * c + i * g
                h_new = o * jnp.tanh(c_new)
                if store:
                    y_sc[t] = h_new     # inter-layer activation stays in VMEM
                return (h_new, c_new)

            # serial time recurrence; full unroll for LLO scheduling at small T
            h_f, c_f = jax.lax.fori_loop(0, T, body,
                                         (h0_ref[l], c0_ref[l]),
                                         unroll=(True if T <= 32 else 8))
            hN_ref[l] = h_f
            cN_ref[l] = c_f
            h_last = h_f

            if not last_layer:
                # TODO(synk): nn.LSTM inter-layer dropout (p=0.2) is a
                # training-mode op; eval semantics (identity) used here.
                layer_in_flat = y_sc[...].reshape(T * B, H)

        # ---- fused ReLU + FC epilogue (only the last timestep is needed) ----
        last = jnp.maximum(h_last, 0.0)                          # (B, H)
        fcw = bpack_ref[L:L + O, 0:H]                            # (O, H)
        fcb = bpack_ref[L:L + O, H:H + 1]                        # (O, 1)
        if O == 1:
            # VPU multiply + lane reduction instead of a degenerate (B,H)@(H,1)
            out_ref[...] = (jnp.sum(last * fcw, axis=-1, keepdims=True) + fcb)
        else:
            out_ref[...] = (jnp.einsum("bh,oh->bo", last, fcw,
                                       preferred_element_type=jnp.float32)
                            + jnp.transpose(fcb))

    return kernel


# -----------------------------------------------------------------------------
# One-time weight re-layout / packing (outside the jitted forward)
# -----------------------------------------------------------------------------
def prepare_params(params, weights_dtype=jnp.float32):
    """Transpose + fuse + pre-scale + pack the weights.

      * W_ih/W_hh transposed to (in, 4H)/(H, 4H); b_ih + b_hh fused.
      * g-gate columns (and bias slice) pre-scaled by 2 so the kernel does
        tanh via 2*sigmoid(2x)-1 with a single EUP pass per step.
      * All LSTM matrices row-stacked (8-row aligned) into ONE array; all
        fused biases + fc weight/bias rows stacked into a SECOND array.
      * `weights_dtype=jnp.bfloat16` enables bf16 MXU operands on v6e/v7x
        (biases / fc stay f32; elementwise math in the kernel stays f32).
    """
    lstm = params["lstm"]
    L = len(lstm)
    O, H = params["fc_w"].shape
    G = 4 * H

    g_scale = jnp.ones((G,), jnp.float32).at[2 * H:3 * H].set(2.0)

    segs, row_meta, off = [], [], 0
    for p in lstm:
        in_dim = p["w_ih"].shape[1]
        wih_t = jnp.transpose(p["w_ih"]) * g_scale[None, :]       # (in, 4H)
        whh_t = jnp.transpose(p["w_hh"]) * g_scale[None, :]       # (H,  4H)
        wih_pad, whh_pad = _ceil8(in_dim), _ceil8(H)
        segs.append(jnp.pad(wih_t, ((0, wih_pad - in_dim), (0, 0))))
        segs.append(jnp.pad(whh_t, ((0, whh_pad - H), (0, 0))))
        row_meta.append((off, in_dim, off + wih_pad))
        off += wih_pad + whh_pad
    wpack = jnp.concatenate(segs, axis=0).astype(weights_dtype)   # (Rw, 4H)

    assert H + 1 <= G, "fc packing needs 4H >= H + 1"
    brows = [(p["b_ih"] + p["b_hh"]) * g_scale for p in lstm]     # L x (4H,)
    for o in range(O):
        row = jnp.zeros((G,), jnp.float32)
        row = row.at[:H].set(params["fc_w"][o])
        row = row.at[H].set(params["fc_b"][o])
        brows.append(row)
    bpack = jnp.stack(brows, axis=0)                              # (L+O, 4H)

    return {"wpack": wpack, "bpack": bpack, "row_meta": tuple(row_meta),
            "L": L, "H": H, "O": O}


def lstmnet_forward(prepped, x_btd, h):
    """x_btd: (B, T, D) batch_first. h = (h0, c0), each (n_layers, B, H)."""
    h0, c0 = h
    B, T, D = x_btd.shape
    L, H, O = prepped["L"], prepped["H"], prepped["O"]
    G = 4 * H

    # batch_first -> time-major (negligible at these shapes; fold into the
    # kernel at production shapes per the review).
    x = jnp.transpose(x_btd, (1, 0, 2))                           # (T, B, D)

    # VMEM budget: inputs + outputs + scratch, 2x headroom, capped at the
    # smallest physical VMEM across current generations (v7x: 64 MiB/core).
    f32b = 4
    need = (T * B * D * f32b + int(prepped["wpack"].nbytes)
            + int(prepped["bpack"].nbytes)
            + 2 * L * B * H * f32b                                # h0, c0
            + B * O * f32b + 2 * L * B * H * f32b                 # outputs
            + T * B * G * f32b + T * B * H * f32b)                # scratch
    vmem_limit = int(min(64 * 1024 * 1024, max(4 * 1024 * 1024, 2 * need)))

    vmem = pl.BlockSpec(memory_space=pltpu.MemorySpace.VMEM)
    out, hN, cN = pl.pallas_call(
        _make_fused_kernel(T, B, D, H, L, O, prepped["row_meta"]),
        out_shape=(
            jax.ShapeDtypeStruct((B, O), jnp.float32),            # fc output
            jax.ShapeDtypeStruct((L, B, H), jnp.float32),         # h_N
            jax.ShapeDtypeStruct((L, B, H), jnp.float32),         # c_N
        ),
        in_specs=[vmem] * 5,
        out_specs=(vmem, vmem, vmem),
        scratch_shapes=[
            pltpu.VMEM((T, B, G), jnp.float32),   # hoisted gate projection
            pltpu.VMEM((T, B, H), jnp.float32),   # inter-layer activations
        ],
        compiler_params=pltpu.CompilerParams(vmem_limit_bytes=vmem_limit),
    )(x, prepped["wpack"], prepped["bpack"], h0, c0)
    return out, (hN, cN)


# -----------------------------------------------------------------------------
# Pure-JAX reference for validation (matches the PyTorch module semantics)
# -----------------------------------------------------------------------------
def lstmnet_reference(params, x_btd, h):
    h0, c0 = h
    B, T, _ = x_btd.shape
    H = h0.shape[-1]
    layer_in = x_btd
    hs, cs = [], []
    for l, p in enumerate(params["lstm"]):
        wih, whh = p["w_ih"], p["w_hh"]
        b = p["b_ih"] + p["b_hh"]
        hv, cv = h0[l], c0[l]
        ys = []
        for t in range(T):
            gates = layer_in[:, t] @ wih.T + hv @ whh.T + b
            i = jax.nn.sigmoid(gates[:, 0 * H:1 * H])
            f = jax.nn.sigmoid(gates[:, 1 * H:2 * H])
            g = jnp.tanh(gates[:, 2 * H:3 * H])
            o = jax.nn.sigmoid(gates[:, 3 * H:4 * H])
            cv = f * cv + i * g
            hv = o * jnp.tanh(cv)
            ys.append(hv)
        layer_in = jnp.stack(ys, axis=1)
        hs.append(hv)
        cs.append(cv)
    last = jnp.maximum(layer_in[:, -1], 0.0)
    out = last @ params["fc_w"].T + params["fc_b"]
    return out, (jnp.stack(hs, 0), jnp.stack(cs, 0))


# -----------------------------------------------------------------------------
# Deterministic parameter init (PyTorch-style uniform(-1/sqrt(H), 1/sqrt(H)))
# -----------------------------------------------------------------------------
def init_params(key, input_dim, hidden_dim, output_dim, n_layers):
    k = 1.0 / jnp.sqrt(hidden_dim)
    params = {"lstm": []}
    for l in range(n_layers):
        in_dim = input_dim if l == 0 else hidden_dim
        key, k1, k2, k3, k4 = jax.random.split(key, 5)
        params["lstm"].append({
            "w_ih": jax.random.uniform(k1, (4 * hidden_dim, in_dim),
                                       jnp.float32, -k, k),
            "w_hh": jax.random.uniform(k2, (4 * hidden_dim, hidden_dim),
                                       jnp.float32, -k, k),
            "b_ih": jax.random.uniform(k3, (4 * hidden_dim,),
                                       jnp.float32, -k, k),
            "b_hh": jax.random.uniform(k4, (4 * hidden_dim,),
                                       jnp.float32, -k, k),
        })
    key, k1, k2 = jax.random.split(key, 3)
    kf = 1.0 / jnp.sqrt(hidden_dim)
    params["fc_w"] = jax.random.uniform(k1, (output_dim, hidden_dim),
                                        jnp.float32, -kf, kf)
    params["fc_b"] = jax.random.uniform(k2, (output_dim,),
                                        jnp.float32, -kf, kf)
    return params


if __name__ == "__main__":
    # small shapes consistent with the module's forward
    B, T, D = 8, 8, 8          # batch, seq len, input_dim
    H, O, L = 32, 1, 2         # hidden_dim, output_dim, n_layers

    key = jax.random.PRNGKey(0)
    key, kx = jax.random.split(key)
    params = init_params(key, D, H, O, L)
    prepped = prepare_params(params)   # one-time re-layout/pack, outside jit

    x = jax.random.normal(kx, (B, T, D), jnp.float32)        # batch_first input
    h0 = jnp.zeros((L, B, H), jnp.float32)                    # init_hidden
    c0 = jnp.zeros((L, B, H), jnp.float32)

    fwd = jax.jit(functools.partial(lstmnet_forward, prepped))
    out, (hN, cN) = fwd(x, (h0, c0))
    jax.block_until_ready((out, hN, cN))

    # validate against pure-JAX reference (tanh == 2*sigmoid(2x)-1 rewrite is
    # exact; small tolerance headroom for EUP approximation differences)
    out_ref, (hN_ref, cN_ref) = lstmnet_reference(params, x, (h0, c0))
    assert out.shape == (B, O)
    assert hN.shape == (L, B, H) and cN.shape == (L, B, H)
    assert jnp.allclose(out, out_ref, atol=1e-4, rtol=1e-4)
    assert jnp.allclose(hN, hN_ref, atol=1e-4, rtol=1e-4)
    assert jnp.allclose(cN, cN_ref, atol=1e-4, rtol=1e-4)

    print("KERNEL_OK")
</pallas_src>

<mosaic_0001>
module attributes {stable_mosaic.version = 11 : i64} {
  func.func @kernel(%arg0: memref<8x8x8xf32, #tpu.memory_space<vmem>>, %arg1: memref<104x128xf32, #tpu.memory_space<vmem>>, %arg2: memref<3x128xf32, #tpu.memory_space<vmem>>, %arg3: memref<2x8x32xf32, #tpu.memory_space<vmem>>, %arg4: memref<2x8x32xf32, #tpu.memory_space<vmem>>, %arg5: memref<8x1xf32, #tpu.memory_space<vmem>>, %arg6: memref<2x8x32xf32, #tpu.memory_space<vmem>>, %arg7: memref<2x8x32xf32, #tpu.memory_space<vmem>>, %arg8: memref<8x8x128xf32, #tpu.memory_space<vmem>>, %arg9: memref<8x8x32xf32, #tpu.memory_space<vmem>>) attributes {dimension_semantics = [], scalar_prefetch = 0 : i64, scratch_operands = 2 : i64, tpu.core_type = #tpu.core_type<tc>} {
    %c0 = arith.constant 0 : index
    %c0_0 = arith.constant 0 : index
    %c0_1 = arith.constant 0 : index
    %0 = vector.load %arg0[%c0, %c0_0, %c0_1] : memref<8x8x8xf32, #tpu.memory_space<vmem>>, vector<8x8x8xf32>
    %1 = vector.shape_cast %0 : vector<8x8x8xf32> to vector<64x8xf32>
    %c0_2 = arith.constant 0 : index
    %c0_3 = arith.constant 0 : index
    %2 = vector.load %arg1[%c0_2, %c0_3] : memref<104x128xf32, #tpu.memory_space<vmem>>, vector<8x128xf32>
    %c8 = arith.constant 8 : index
    %c0_4 = arith.constant 0 : index
    %3 = vector.load %arg1[%c8, %c0_4] : memref<104x128xf32, #tpu.memory_space<vmem>>, vector<32x128xf32>
    %c0_5 = arith.constant 0 : index
    %c0_6 = arith.constant 0 : index
    %4 = vector.load %arg2[%c0_5, %c0_6] : memref<3x128xf32, #tpu.memory_space<vmem>>, vector<1x128xf32>
    %cst = arith.constant dense<0.000000e+00> : vector<64x128xf32>
    %5 = tpu.matmul %1, %2, %cst {dimension_numbers = #tpu.dot_dimension_numbers<[1], [0], [0], [1], [0, 0, 1, 1], [], []>} : vector<64x8xf32>, vector<8x128xf32>, vector<64x128xf32> -> vector<64x128xf32>
    %6 = vector.broadcast %4 : vector<1x128xf32> to vector<64x128xf32>
    %7 = arith.addf %5, %6 : vector<64x128xf32>
    %8 = vector.shape_cast %7 : vector<64x128xf32> to vector<8x8x128xf32>
    %c0_7 = arith.constant 0 : index
    %c0_8 = arith.constant 0 : index
    %c0_9 = arith.constant 0 : index
    %9 = vector.load %arg8[%c0_7, %c0_8, %c0_9] : memref<8x8x128xf32, #tpu.memory_space<vmem>>, vector<8x8x128xf32>
    tpu.vector_store %arg8[%c0_7, %c0_8, %c0_9], %8 {strides = array<i32>} : memref<8x8x128xf32, #tpu.memory_space<vmem>>, vector<8x8x128xf32>,
    %c0_10 = arith.constant 0 : index
    %c0_11 = arith.constant 0 : index
    %c0_12 = arith.constant 0 : index
    %10 = vector.load %arg3[%c0_10, %c0_11, %c0_12] : memref<2x8x32xf32, #tpu.memory_space<vmem>>, vector<1x8x32xf32>
    %11 = vector.shape_cast %10 : vector<1x8x32xf32> to vector<8x32xf32>
    %c0_13 = arith.constant 0 : index
    %c0_14 = arith.constant 0 : index
    %c0_15 = arith.constant 0 : index
    %12 = vector.load %arg4[%c0_13, %c0_14, %c0_15] : memref<2x8x32xf32, #tpu.memory_space<vmem>>, vector<1x8x32xf32>
    %13 = vector.shape_cast %12 : vector<1x8x32xf32> to vector<8x32xf32>
    %c0_i32 = arith.constant 0 : i32
    %14 = arith.index_cast %c0_i32 : i32 to index
    %c0_16 = arith.constant 0 : index
    %c0_17 = arith.constant 0 : index
    %15 = vector.load %arg8[%14, %c0_16, %c0_17] : memref<8x8x128xf32, #tpu.memory_space<vmem>>, vector<1x8x128xf32>
    %16 = vector.shape_cast %15 : vector<1x8x128xf32> to vector<8x128xf32>
    %cst_18 = arith.constant dense<0.000000e+00> : vector<8x128xf32>
    %17 = tpu.matmul %11, %3, %cst_18 {dimension_numbers = #tpu.dot_dimension_numbers<[1], [0], [0], [1], [0, 0, 1, 1], [], []>} : vector<8x32xf32>, vector<32x128xf32>, vector<8x128xf32> -> vector<8x128xf32>
    %18 = arith.addf %16, %17 : vector<8x128xf32>
    %19 = arith.negf %18 : vector<8x128xf32>
    %20 = math.exp %19 : vector<8x128xf32>
    %cst_19 = arith.constant 1.000000e+00 : f32
    %21 = vector.broadcast %cst_19 : f32 to vector<8x128xf32>
    %22 = arith.addf %21, %20 : vector<8x128xf32>
    %23 = arith.divf %21, %22 : vector<8x128xf32>
    %24 = vector.extract_strided_slice %23 {offsets = [0, 0], sizes = [8, 32], strides = [1, 1]} : vector<8x128xf32> to vector<8x32xf32>
    %25 = vector.extract_strided_slice %23 {offsets = [0, 32], sizes = [8, 32], strides = [1, 1]} : vector<8x128xf32> to vector<8x32xf32>
    %26 = vector.extract_strided_slice %23 {offsets = [0, 64], sizes = [8, 32], strides = [1, 1]} : vector<8x128xf32> to vector<8x32xf32>
    %cst_20 = arith.constant 2.000000e+00 : f32
    %27 = vector.broadcast %cst_20 : f32 to vector<8x32xf32>
    %28 = arith.mulf %27, %26 : vector<8x32xf32>
    %cst_21 = arith.constant 1.000000e+00 : f32
    %29 = vector.broadcast %cst_21 : f32 to vector<8x32xf32>
    %30 = arith.subf %28, %29 : vector<8x32xf32>
    %31 = vector.extract_strided_slice %23 {offsets = [0, 96], sizes = [8, 32], strides = [1, 1]} : vector<8x128xf32> to vector<8x32xf32>
    %32 = arith.mulf %25, %13 : vector<8x32xf32>
    %33 = arith.mulf %24, %30 : vector<8x32xf32>
    %34 = arith.addf %32, %33 : vector<8x32xf32>
    %35 = math.tanh %34 : vector<8x32xf32>
    %36 = arith.mulf %31, %35 : vector<8x32xf32>
    %37 = arith.index_cast %c0_i32 : i32 to index
    %c0_22 = arith.constant 0 : index
    %c0_23 = arith.constant 0 : index
    %38 = vector.load %arg9[%37, %c0_22, %c0_23] : memref<8x8x32xf32, #tpu.memory_space<vmem>>, vector<1x8x32xf32>
    %39 = vector.shape_cast %38 : vector<1x8x32xf32> to vector<8x32xf32>
    %40 = vector.shape_cast %36 : vector<8x32xf32> to vector<1x8x32xf32>
    tpu.vector_store %arg9[%37, %c0_22, %c0_23], %40 {strides = array<i32>} : memref<8x8x32xf32, #tpu.memory_space<vmem>>, vector<1x8x32xf32>,
    %c1_i32 = arith.constant 1 : i32
    %41 = arith.index_cast %c1_i32 : i32 to index
    %c0_24 = arith.constant 0 : index
    %c0_25 = arith.constant 0 : index
    %42 = vector.load %arg8[%41, %c0_24, %c0_25] : memref<8x8x128xf32, #tpu.memory_space<vmem>>, vector<1x8x128xf32>
    %43 = vector.shape_cast %42 : vector<1x8x128xf32> to vector<8x128xf32>
    %cst_26 = arith.constant dense<0.000000e+00> : vector<8x128xf32>
    %44 = tpu.matmul %36, %3, %cst_26 {dimension_numbers = #tpu.dot_dimension_numbers<[1], [0], [0], [1], [0, 0, 1, 1], [], []>} : vector<8x32xf32>, vector<32x128xf32>, vector<8x128xf32> -> vector<8x128xf32>
    %45 = arith.addf %43, %44 : vector<8x128xf32>
    %46 = arith.negf %45 : vector<8x128xf32>
    %47 = math.exp %46 : vector<8x128xf32>
    %cst_27 = arith.constant 1.000000e+00 : f32
    %48 = vector.broadcast %cst_27 : f32 to vector<8x128xf32>
    %49 = arith.addf %48, %47 : vector<8x128xf32>
    %50 = arith.divf %48, %49 : vector<8x128xf32>
    %51 = vector.extract_strided_slice %50 {offsets = [0, 0], sizes = [8, 32], strides = [1, 1]} : vector<8x128xf32> to vector<8x32xf32>
    %52 = vector.extract_strided_slice %50 {offsets = [0, 32], sizes = [8, 32], strides = [1, 1]} : vector<8x128xf32> to vector<8x32xf32>
    %53 = vector.extract_strided_slice %50 {offsets = [0, 64], sizes = [8, 32], strides = [1, 1]} : vector<8x128xf32> to vector<8x32xf32>
    %cst_28 = arith.constant 2.000000e+00 : f32
    %54 = vector.broadcast %cst_28 : f32 to vector<8x32xf32>
    %55 = arith.mulf %54, %53 : vector<8x32xf32>
    %cst_29 = arith.constant 1.000000e+00 : f32
    %56 = vector.broadcast %cst_29 : f32 to vector<8x32xf32>
    %57 = arith.subf %55, %56 : vector<8x32xf32>
    %58 = vector.extract_strided_slice %50 {offsets = [0, 96], sizes = [8, 32], strides = [1, 1]} : vector<8x128xf32> to vector<8x32xf32>
    %59 = arith.mulf %52, %34 : vector<8x32xf32>
    %60 = arith.mulf %51, %57 : vector<8x32xf32>
    %61 = arith.addf %59, %60 : vector<8x32xf32>
    %62 = math.tanh %61 : vector<8x32xf32>
    %63 = arith.mulf %58, %62 : vector<8x32xf32>
    %64 = arith.index_cast %c1_i32 : i32 to index
    %c0_30 = arith.constant 0 : index
    %c0_31 = arith.constant 0 : index
    %65 = vector.load %arg9[%64, %c0_30, %c0_31] : memref<8x8x32xf32, #tpu.memory_space<vmem>>, vector<1x8x32xf32>
    %66 = vector.shape_cast %65 : vector<1x8x32xf32> to vector<8x32xf32>
    %67 = vector.shape_cast %63 : vector<8x32xf32> to vector<1x8x32xf32>
    tpu.vector_store %arg9[%64, %c0_30, %c0_31], %67 {strides = array<i32>} : memref<8x8x32xf32, #tpu.memory_space<vmem>>, vector<1x8x32xf32>,
    %c2_i32 = arith.constant 2 : i32
    %68 = arith.index_cast %c2_i32 : i32 to index
    %c0_32 = arith.constant 0 : index
    %c0_33 = arith.constant 0 : index
    %69 = vector.load %arg8[%68, %c0_32, %c0_33] : memref<8x8x128xf32, #tpu.memory_space<vmem>>, vector<1x8x128xf32>
    %70 = vector.shape_cast %69 : vector<1x8x128xf32> to vector<8x128xf32>
    %cst_34 = arith.constant dense<0.000000e+00> : vector<8x128xf32>
    %71 = tpu.matmul %63, %3, %cst_34 {dimension_numbers = #tpu.dot_dimension_numbers<[1], [0], [0], [1], [0, 0, 1, 1], [], []>} : vector<8x32xf32>, vector<32x128xf32>, vector<8x128xf32> -> vector<8x128xf32>
    %72 = arith.addf %70, %71 : vector<8x128xf32>
    %73 = arith.negf %72 : vector<8x128xf32>
    %74 = math.exp %73 : vector<8x128xf32>
    %cst_35 = arith.constant 1.000000e+00 : f32
    %75 = vector.broadcast %cst_35 : f32 to vector<8x128xf32>
    %76 = arith.addf %75, %74 : vector<8x128xf32>
    %77 = arith.divf %75, %76 : vector<8x128xf32>
    %78 = vector.extract_strided_slice %77 {offsets = [0, 0], sizes = [8, 32], strides = [1, 1]} : vector<8x128xf32> to vector<8x32xf32>
    %79 = vector.extract_strided_slice %77 {offsets = [0, 32], sizes = [8, 32], strides = [1, 1]} : vector<8x128xf32> to vector<8x32xf32>
    %80 = vector.extract_strided_slice %77 {offsets = [0, 64], sizes = [8, 32], strides = [1, 1]} : vector<8x128xf32> to vector<8x32xf32>
    %cst_36 = arith.constant 2.000000e+00 : f32
    %81 = vector.broadcast %cst_36 : f32 to vector<8x32xf32>
    %82 = arith.mulf %81, %80 : vector<8x32xf32>
    %cst_37 = arith.constant 1.000000e+00 : f32
    %83 = vector.broadcast %cst_37 : f32 to vector<8x32xf32>
    %84 = arith.subf %82, %83 : vector<8x32xf32>
    %85 = vector.extract_strided_slice %77 {offsets = [0, 96], sizes = [8, 32], strides = [1, 1]} : vector<8x128xf32> to vector<8x32xf32>
    %86 = arith.mulf %79, %61 : vector<8x32xf32>
    %87 = arith.mulf %78, %84 : vector<8x32xf32>
    %88 = arith.addf %86, %87 : vector<8x32xf32>
    %89 = math.tanh %88 : vector<8x32xf32>
    %90 = arith.mulf %85, %89 : vector<8x32xf32>
    %91 = arith.index_cast %c2_i32 : i32 to index
    %c0_38 = arith.constant 0 : index
    %c0_39 = arith.constant 0 : index
    %92 = vector.load %arg9[%91, %c0_38, %c0_39] : memref<8x8x32xf32, #tpu.memory_space<vmem>>, vector<1x8x32xf32>
    %93 = vector.shape_cast %92 : vector<1x8x32xf32> to vector<8x32xf32>
    %94 = vector.shape_cast %90 : vector<8x32xf32> to vector<1x8x32xf32>
    tpu.vector_store %arg9[%91, %c0_38, %c0_39], %94 {strides = array<i32>} : memref<8x8x32xf32, #tpu.memory_space<vmem>>, vector<1x8x32xf32>,
    %c3_i32 = arith.constant 3 : i32
    %95 = arith.index_cast %c3_i32 : i32 to index
    %c0_40 = arith.constant 0 : index
    %c0_41 = arith.constant 0 : index
    %96 = vector.load %arg8[%95, %c0_40, %c0_41] : memref<8x8x128xf32, #tpu.memory_space<vmem>>, vector<1x8x128xf32>
    %97 = vector.shape_cast %96 : vector<1x8x128xf32> to vector<8x128xf32>
    %cst_42 = arith.constant dense<0.000000e+00> : vector<8x128xf32>
    %98 = tpu.matmul %90, %3, %cst_42 {dimension_numbers = #tpu.dot_dimension_numbers<[1], [0], [0], [1], [0, 0, 1, 1], [], []>} : vector<8x32xf32>, vector<32x128xf32>, vector<8x128xf32> -> vector<8x128xf32>
    %99 = arith.addf %97, %98 : vector<8x128xf32>
    %100 = arith.negf %99 : vector<8x128xf32>
    %101 = math.exp %100 : vector<8x128xf32>
    %cst_43 = arith.constant 1.000000e+00 : f32
    %102 = vector.broadcast %cst_43 : f32 to vector<8x128xf32>
    %103 = arith.addf %102, %101 : vector<8x128xf32>
    %104 = arith.divf %102, %103 : vector<8x128xf32>
    %105 = vector.extract_strided_slice %104 {offsets = [0, 0], sizes = [8, 32], strides = [1, 1]} : vector<8x128xf32> to vector<8x32xf32>
    %106 = vector.extract_strided_slice %104 {offsets = [0, 32], sizes = [8, 32], strides = [1, 1]} : vector<8x128xf32> to vector<8x32xf32>
    %107 = vector.extract_strided_slice %104 {offsets = [0, 64], sizes = [8, 32], strides = [1, 1]} : vector<8x128xf32> to vector<8x32xf32>
    %cst_44 = arith.constant 2.000000e+00 : f32
    %108 = vector.broadcast %cst_44 : f32 to vector<8x32xf32>
    %109 = arith.mulf %108, %107 : vector<8x32xf32>
    %cst_45 = arith.constant 1.000000e+00 : f32
    %110 = vector.broadcast %cst_45 : f32 to vector<8x32xf32>
    %111 = arith.subf %109, %110 : vector<8x32xf32>
    %112 = vector.extract_strided_slice %104 {offsets = [0, 96], sizes = [8, 32], strides = [1, 1]} : vector<8x128xf32> to vector<8x32xf32>
    %113 = arith.mulf %106, %88 : vector<8x32xf32>
    %114 = arith.mulf %105, %111 : vector<8x32xf32>
    %115 = arith.addf %113, %114 : vector<8x32xf32>
    %116 = math.tanh %115 : vector<8x32xf32>
    %117 = arith.mulf %112, %116 : vector<8x32xf32>
    %118 = arith.index_cast %c3_i32 : i32 to index
    %c0_46 = arith.constant 0 : index
    %c0_47 = arith.constant 0 : index
    %119 = vector.load %arg9[%118, %c0_46, %c0_47] : memref<8x8x32xf32, #tpu.memory_space<vmem>>, vector<1x8x32xf32>
    %120 = vector.shape_cast %119 : vector<1x8x32xf32> to vector<8x32xf32>
    %121 = vector.shape_cast %117 : vector<8x32xf32> to vector<1x8x32xf32>
    tpu.vector_store %arg9[%118, %c0_46, %c0_47], %121 {strides = array<i32>} : memref<8x8x32xf32, #tpu.memory_space<vmem>>, vector<1x8x32xf32>,
    %c4_i32 = arith.constant 4 : i32
    %122 = arith.index_cast %c4_i32 : i32 to index
    %c0_48 = arith.constant 0 : index
    %c0_49 = arith.constant 0 : index
    %123 = vector.load %arg8[%122, %c0_48, %c0_49] : memref<8x8x128xf32, #tpu.memory_space<vmem>>, vector<1x8x128xf32>
    %124 = vector.shape_cast %123 : vector<1x8x128xf32> to vector<8x128xf32>
    %cst_50 = arith.constant dense<0.000000e+00> : vector<8x128xf32>
    %125 = tpu.matmul %117, %3, %cst_50 {dimension_numbers = #tpu.dot_dimension_numbers<[1], [0], [0], [1], [0, 0, 1, 1], [], []>} : vector<8x32xf32>, vector<32x128xf32>, vector<8x128xf32> -> vector<8x128xf32>
    %126 = arith.addf %124, %125 : vector<8x128xf32>
    %127 = arith.negf %126 : vector<8x128xf32>
    %128 = math.exp %127 : vector<8x128xf32>
    %cst_51 = arith.constant 1.000000e+00 : f32
    %129 = vector.broadcast %cst_51 : f32 to vector<8x128xf32>
    %130 = arith.addf %129, %128 : vector<8x128xf32>
    %131 = arith.divf %129, %130 : vector<8x128xf32>
    %132 = vector.extract_strided_slice %131 {offsets = [0, 0], sizes = [8, 32], strides = [1, 1]} : vector<8x128xf32> to vector<8x32xf32>
    %133 = vector.extract_strided_slice %131 {offsets = [0, 32], sizes = [8, 32], strides = [1, 1]} : vector<8x128xf32> to vector<8x32xf32>
    %134 = vector.extract_strided_slice %131 {offsets = [0, 64], sizes = [8, 32], strides = [1, 1]} : vector<8x128xf32> to vector<8x32xf32>
    %cst_52 = arith.constant 2.000000e+00 : f32
    %135 = vector.broadcast %cst_52 : f32 to vector<8x32xf32>
    %136 = arith.mulf %135, %134 : vector<8x32xf32>
    %cst_53 = arith.constant 1.000000e+00 : f32
    %137 = vector.broadcast %cst_53 : f32 to vector<8x32xf32>
    %138 = arith.subf %136, %137 : vector<8x32xf32>
    %139 = vector.extract_strided_slice %131 {offsets = [0, 96], sizes = [8, 32], strides = [1, 1]} : vector<8x128xf32> to vector<8x32xf32>
    %140 = arith.mulf %133, %115 : vector<8x32xf32>
    %141 = arith.mulf %132, %138 : vector<8x32xf32>
    %142 = arith.addf %140, %141 : vector<8x32xf32>
    %143 = math.tanh %142 : vector<8x32xf32>
    %144 = arith.mulf %139, %143 : vector<8x32xf32>
    %145 = arith.index_cast %c4_i32 : i32 to index
    %c0_54 = arith.constant 0 : index
    %c0_55 = arith.constant 0 : index
    %146 = vector.load %arg9[%145, %c0_54, %c0_55] : memref<8x8x32xf32, #tpu.memory_space<vmem>>, vector<1x8x32xf32>
    %147 = vector.shape_cast %146 : vector<1x8x32xf32> to vector<8x32xf32>
    %148 = vector.shape_cast %144 : vector<8x32xf32> to vector<1x8x32xf32>
    tpu.vector_store %arg9[%145, %c0_54, %c0_55], %148 {strides = array<i32>} : memref<8x8x32xf32, #tpu.memory_space<vmem>>, vector<1x8x32xf32>,
    %c5_i32 = arith.constant 5 : i32
    %149 = arith.index_cast %c5_i32 : i32 to index
    %c0_56 = arith.constant 0 : index
    %c0_57 = arith.constant 0 : index
    %150 = vector.load %arg8[%149, %c0_56, %c0_57] : memref<8x8x128xf32, #tpu.memory_space<vmem>>, vector<1x8x128xf32>
    %151 = vector.shape_cast %150 : vector<1x8x128xf32> to vector<8x128xf32>
    %cst_58 = arith.constant dense<0.000000e+00> : vector<8x128xf32>
    %152 = tpu.matmul %144, %3, %cst_58 {dimension_numbers = #tpu.dot_dimension_numbers<[1], [0], [0], [1], [0, 0, 1, 1], [], []>} : vector<8x32xf32>, vector<32x128xf32>, vector<8x128xf32> -> vector<8x128xf32>
    %153 = arith.addf %151, %152 : vector<8x128xf32>
    %154 = arith.negf %153 : vector<8x128xf32>
    %155 = math.exp %154 : vector<8x128xf32>
    %cst_59 = arith.constant 1.000000e+00 : f32
    %156 = vector.broadcast %cst_59 : f32 to vector<8x128xf32>
    %157 = arith.addf %156, %155 : vector<8x128xf32>
    %158 = arith.divf %156, %157 : vector<8x128xf32>
    %159 = vector.extract_strided_slice %158 {offsets = [0, 0], sizes = [8, 32], strides = [1, 1]} : vector<8x128xf32> to vector<8x32xf32>
    %160 = vector.extract_strided_slice %158 {offsets = [0, 32], sizes = [8, 32], strides = [1, 1]} : vector<8x128xf32> to vector<8x32xf32>
    %161 = vector.extract_strided_slice %158 {offsets = [0, 64], sizes = [8, 32], strides = [1, 1]} : vector<8x128xf32> to vector<8x32xf32>
    %cst_60 = arith.constant 2.000000e+00 : f32
    %162 = vector.broadcast %cst_60 : f32 to vector<8x32xf32>
    %163 = arith.mulf %162, %161 : vector<8x32xf32>
    %cst_61 = arith.constant 1.000000e+00 : f32
    %164 = vector.broadcast %cst_61 : f32 to vector<8x32xf32>
    %165 = arith.subf %163, %164 : vector<8x32xf32>
    %166 = vector.extract_strided_slice %158 {offsets = [0, 96], sizes = [8, 32], strides = [1, 1]} : vector<8x128xf32> to vector<8x32xf32>
    %167 = arith.mulf %160, %142 : vector<8x32xf32>
    %168 = arith.mulf %159, %165 : vector<8x32xf32>
    %169 = arith.addf %167, %168 : vector<8x32xf32>
    %170 = math.tanh %169 : vector<8x32xf32>
    %171 = arith.mulf %166, %170 : vector<8x32xf32>
    %172 = arith.index_cast %c5_i32 : i32 to index
    %c0_62 = arith.constant 0 : index
    %c0_63 = arith.constant 0 : index
    %173 = vector.load %arg9[%172, %c0_62, %c0_63] : memref<8x8x32xf32, #tpu.memory_space<vmem>>, vector<1x8x32xf32>
    %174 = vector.shape_cast %173 : vector<1x8x32xf32> to vector<8x32xf32>
    %175 = vector.shape_cast %171 : vector<8x32xf32> to vector<1x8x32xf32>
    tpu.vector_store %arg9[%172, %c0_62, %c0_63], %175 {strides = array<i32>} : memref<8x8x32xf32, #tpu.memory_space<vmem>>, vector<1x8x32xf32>,
    %c6_i32 = arith.constant 6 : i32
    %176 = arith.index_cast %c6_i32 : i32 to index
    %c0_64 = arith.constant 0 : index
    %c0_65 = arith.constant 0 : index
    %177 = vector.load %arg8[%176, %c0_64, %c0_65] : memref<8x8x128xf32, #tpu.memory_space<vmem>>, vector<1x8x128xf32>
    %178 = vector.shape_cast %177 : vector<1x8x128xf32> to vector<8x128xf32>
    %cst_66 = arith.constant dense<0.000000e+00> : vector<8x128xf32>
    %179 = tpu.matmul %171, %3, %cst_66 {dimension_numbers = #tpu.dot_dimension_numbers<[1], [0], [0], [1], [0, 0, 1, 1], [], []>} : vector<8x32xf32>, vector<32x128xf32>, vector<8x128xf32> -> vector<8x128xf32>
    %180 = arith.addf %178, %179 : vector<8x128xf32>
    %181 = arith.negf %180 : vector<8x128xf32>
    %182 = math.exp %181 : vector<8x128xf32>
    %cst_67 = arith.constant 1.000000e+00 : f32
    %183 = vector.broadcast %cst_67 : f32 to vector<8x128xf32>
    %184 = arith.addf %183, %182 : vector<8x128xf32>
    %185 = arith.divf %183, %184 : vector<8x128xf32>
    %186 = vector.extract_strided_slice %185 {offsets = [0, 0], sizes = [8, 32], strides = [1, 1]} : vector<8x128xf32> to vector<8x32xf32>
    %187 = vector.extract_strided_slice %185 {offsets = [0, 32], sizes = [8, 32], strides = [1, 1]} : vector<8x128xf32> to vector<8x32xf32>
    %188 = vector.extract_strided_slice %185 {offsets = [0, 64], sizes = [8, 32], strides = [1, 1]} : vector<8x128xf32> to vector<8x32xf32>
    %cst_68 = arith.constant 2.000000e+00 : f32
    %189 = vector.broadcast %cst_68 : f32 to vector<8x32xf32>
    %190 = arith.mulf %189, %188 : vector<8x32xf32>
    %cst_69 = arith.constant 1.000000e+00 : f32
    %191 = vector.broadcast %cst_69 : f32 to vector<8x32xf32>
    %192 = arith.subf %190, %191 : vector<8x32xf32>
    %193 = vector.extract_strided_slice %185 {offsets = [0, 96], sizes = [8, 32], strides = [1, 1]} : vector<8x128xf32> to vector<8x32xf32>
    %194 = arith.mulf %187, %169 : vector<8x32xf32>
    %195 = arith.mulf %186, %192 : vector<8x32xf32>
    %196 = arith.addf %194, %195 : vector<8x32xf32>
    %197 = math.tanh %196 : vector<8x32xf32>
    %198 = arith.mulf %193, %197 : vector<8x32xf32>
    %199 = arith.index_cast %c6_i32 : i32 to index
    %c0_70 = arith.constant 0 : index
    %c0_71 = arith.constant 0 : index
    %200 = vector.load %arg9[%199, %c0_70, %c0_71] : memref<8x8x32xf32, #tpu.memory_space<vmem>>, vector<1x8x32xf32>
    %201 = vector.shape_cast %200 : vector<1x8x32xf32> to vector<8x32xf32>
    %202 = vector.shape_cast %198 : vector<8x32xf32> to vector<1x8x32xf32>
    tpu.vector_store %arg9[%199, %c0_70, %c0_71], %202 {strides = array<i32>} : memref<8x8x32xf32, #tpu.memory_space<vmem>>, vector<1x8x32xf32>,
    %c7_i32 = arith.constant 7 : i32
    %203 = arith.index_cast %c7_i32 : i32 to index
    %c0_72 = arith.constant 0 : index
    %c0_73 = arith.constant 0 : index
    %204 = vector.load %arg8[%203, %c0_72, %c0_73] : memref<8x8x128xf32, #tpu.memory_space<vmem>>, vector<1x8x128xf32>
    %205 = vector.shape_cast %204 : vector<1x8x128xf32> to vector<8x128xf32>
    %cst_74 = arith.constant dense<0.000000e+00> : vector<8x128xf32>
    %206 = tpu.matmul %198, %3, %cst_74 {dimension_numbers = #tpu.dot_dimension_numbers<[1], [0], [0], [1], [0, 0, 1, 1], [], []>} : vector<8x32xf32>, vector<32x128xf32>, vector<8x128xf32> -> vector<8x128xf32>
    %207 = arith.addf %205, %206 : vector<8x128xf32>
    %208 = arith.negf %207 : vector<8x128xf32>
    %209 = math.exp %208 : vector<8x128xf32>
    %cst_75 = arith.constant 1.000000e+00 : f32
    %210 = vector.broadcast %cst_75 : f32 to vector<8x128xf32>
    %211 = arith.addf %210, %209 : vector<8x128xf32>
    %212 = arith.divf %210, %211 : vector<8x128xf32>
    %213 = vector.extract_strided_slice %212 {offsets = [0, 0], sizes = [8, 32], strides = [1, 1]} : vector<8x128xf32> to vector<8x32xf32>
    %214 = vector.extract_strided_slice %212 {offsets = [0, 32], sizes = [8, 32], strides = [1, 1]} : vector<8x128xf32> to vector<8x32xf32>
    %215 = vector.extract_strided_slice %212 {offsets = [0, 64], sizes = [8, 32], strides = [1, 1]} : vector<8x128xf32> to vector<8x32xf32>
    %cst_76 = arith.constant 2.000000e+00 : f32
    %216 = vector.broadcast %cst_76 : f32 to vector<8x32xf32>
    %217 = arith.mulf %216, %215 : vector<8x32xf32>
    %cst_77 = arith.constant 1.000000e+00 : f32
    %218 = vector.broadcast %cst_77 : f32 to vector<8x32xf32>
    %219 = arith.subf %217, %218 : vector<8x32xf32>
    %220 = vector.extract_strided_slice %212 {offsets = [0, 96], sizes = [8, 32], strides = [1, 1]} : vector<8x128xf32> to vector<8x32xf32>
    %221 = arith.mulf %214, %196 : vector<8x32xf32>
    %222 = arith.mulf %213, %219 : vector<8x32xf32>
    %223 = arith.addf %221, %222 : vector<8x32xf32>
    %224 = math.tanh %223 : vector<8x32xf32>
    %225 = arith.mulf %220, %224 : vector<8x32xf32>
    %226 = arith.index_cast %c7_i32 : i32 to index
    %c0_78 = arith.constant 0 : index
    %c0_79 = arith.constant 0 : index
    %227 = vector.load %arg9[%226, %c0_78, %c0_79] : memref<8x8x32xf32, #tpu.memory_space<vmem>>, vector<1x8x32xf32>
    %228 = vector.shape_cast %227 : vector<1x8x32xf32> to vector<8x32xf32>
    %229 = vector.shape_cast %225 : vector<8x32xf32> to vector<1x8x32xf32>
    tpu.vector_store %arg9[%226, %c0_78, %c0_79], %229 {strides = array<i32>} : memref<8x8x32xf32, #tpu.memory_space<vmem>>, vector<1x8x32xf32>,
    %c8_i32 = arith.constant 8 : i32
    %c0_80 = arith.constant 0 : index
    %c0_81 = arith.constant 0 : index
    %c0_82 = arith.constant 0 : index
    %230 = vector.load %arg6[%c0_80, %c0_81, %c0_82] : memref<2x8x32xf32, #tpu.memory_space<vmem>>, vector<1x8x32xf32>
    %231 = vector.shape_cast %230 : vector<1x8x32xf32> to vector<8x32xf32>
    %232 = vector.shape_cast %225 : vector<8x32xf32> to vector<1x8x32xf32>
    tpu.vector_store %arg6[%c0_80, %c0_81, %c0_82], %232 {strides = array<i32>} : memref<2x8x32xf32, #tpu.memory_space<vmem>>, vector<1x8x32xf32>,
    %c0_83 = arith.constant 0 : index
    %c0_84 = arith.constant 0 : index
    %c0_85 = arith.constant 0 : index
    %233 = vector.load %arg7[%c0_83, %c0_84, %c0_85] : memref<2x8x32xf32, #tpu.memory_space<vmem>>, vector<1x8x32xf32>
    %234 = vector.shape_cast %233 : vector<1x8x32xf32> to vector<8x32xf32>
    %235 = vector.shape_cast %223 : vector<8x32xf32> to vector<1x8x32xf32>
    tpu.vector_store %arg7[%c0_83, %c0_84, %c0_85], %235 {strides = array<i32>} : memref<2x8x32xf32, #tpu.memory_space<vmem>>, vector<1x8x32xf32>,
    %c0_86 = arith.constant 0 : index
    %c0_87 = arith.constant 0 : index
    %c0_88 = arith.constant 0 : index
    %236 = vector.load %arg9[%c0_86, %c0_87, %c0_88] : memref<8x8x32xf32, #tpu.memory_space<vmem>>, vector<8x8x32xf32>
    %237 = vector.shape_cast %236 : vector<8x8x32xf32> to vector<64x32xf32>
    %c40 = arith.constant 40 : index
    %c0_89 = arith.constant 0 : index
    %238 = vector.load %arg1[%c40, %c0_89] : memref<104x128xf32, #tpu.memory_space<vmem>>, vector<32x128xf32>
    %c72 = arith.constant 72 : index
    %c0_90 = arith.constant 0 : index
    %239 = vector.load %arg1[%c72, %c0_90] : memref<104x128xf32, #tpu.memory_space<vmem>>, vector<32x128xf32>
    %c1 = arith.constant 1 : index
    %c0_91 = arith.constant 0 : index
    %240 = vector.load %arg2[%c1, %c0_91] : memref<3x128xf32, #tpu.memory_space<vmem>>, vector<1x128xf32>
    %cst_92 = arith.constant dense<0.000000e+00> : vector<64x128xf32>
    %241 = tpu.matmul %237, %238, %cst_92 {dimension_numbers = #tpu.dot_dimension_numbers<[1], [0], [0], [1], [0, 0, 1, 1], [], []>} : vector<64x32xf32>, vector<32x128xf32>, vector<64x128xf32> -> vector<64x128xf32>
    %242 = vector.broadcast %240 : vector<1x128xf32> to vector<64x128xf32>
    %243 = arith.addf %241, %242 : vector<64x128xf32>
    %244 = vector.shape_cast %243 : vector<64x128xf32> to vector<8x8x128xf32>
    %c0_93 = arith.constant 0 : index
    %c0_94 = arith.constant 0 : index
    %c0_95 = arith.constant 0 : index
    %245 = vector.load %arg8[%c0_93, %c0_94, %c0_95] : memref<8x8x128xf32, #tpu.memory_space<vmem>>, vector<8x8x128xf32>
    tpu.vector_store %arg8[%c0_93, %c0_94, %c0_95], %244 {strides = array<i32>} : memref<8x8x128xf32, #tpu.memory_space<vmem>>, vector<8x8x128xf32>,
    %c1_96 = arith.constant 1 : index
    %c0_97 = arith.constant 0 : index
    %c0_98 = arith.constant 0 : index
    %246 = vector.load %arg3[%c1_96, %c0_97, %c0_98] : memref<2x8x32xf32, #tpu.memory_space<vmem>>, vector<1x8x32xf32>
    %247 = vector.shape_cast %246 : vector<1x8x32xf32> to vector<8x32xf32>
    %c1_99 = arith.constant 1 : index
    %c0_100 = arith.constant 0 : index
    %c0_101 = arith.constant 0 : index
    %248 = vector.load %arg4[%c1_99, %c0_100, %c0_101] : memref<2x8x32xf32, #tpu.memory_space<vmem>>, vector<1x8x32xf32>
    %249 = vector.shape_cast %248 : vector<1x8x32xf32> to vector<8x32xf32>
    %c0_i32_102 = arith.constant 0 : i32
    %250 = arith.index_cast %c0_i32_102 : i32 to index
    %c0_103 = arith.constant 0 : index
    %c0_104 = arith.constant 0 : index
    %251 = vector.load %arg8[%250, %c0_103, %c0_104] : memref<8x8x128xf32, #tpu.memory_space<vmem>>, vector<1x8x128xf32>
    %252 = vector.shape_cast %251 : vector<1x8x128xf32> to vector<8x128xf32>
    %cst_105 = arith.constant dense<0.000000e+00> : vector<8x128xf32>
    %253 = tpu.matmul %247, %239, %cst_105 {dimension_numbers = #tpu.dot_dimension_numbers<[1], [0], [0], [1], [0, 0, 1, 1], [], []>} : vector<8x32xf32>, vector<32x128xf32>, vector<8x128xf32> -> vector<8x128xf32>
    %254 = arith.addf %252, %253 : vector<8x128xf32>
    %255 = arith.negf %254 : vector<8x128xf32>
    %256 = math.exp %255 : vector<8x128xf32>
    %cst_106 = arith.constant 1.000000e+00 : f32
    %257 = vector.broadcast %cst_106 : f32 to vector<8x128xf32>
    %258 = arith.addf %257, %256 : vector<8x128xf32>
    %259 = arith.divf %257, %258 : vector<8x128xf32>
    %260 = vector.extract_strided_slice %259 {offsets = [0, 0], sizes = [8, 32], strides = [1, 1]} : vector<8x128xf32> to vector<8x32xf32>
    %261 = vector.extract_strided_slice %259 {offsets = [0, 32], sizes = [8, 32], strides = [1, 1]} : vector<8x128xf32> to vector<8x32xf32>
    %262 = vector.extract_strided_slice %259 {offsets = [0, 64], sizes = [8, 32], strides = [1, 1]} : vector<8x128xf32> to vector<8x32xf32>
    %cst_107 = arith.constant 2.000000e+00 : f32
    %263 = vector.broadcast %cst_107 : f32 to vector<8x32xf32>
    %264 = arith.mulf %263, %262 : vector<8x32xf32>
    %cst_108 = arith.constant 1.000000e+00 : f32
    %265 = vector.broadcast %cst_108 : f32 to vector<8x32xf32>
    %266 = arith.subf %264, %265 : vector<8x32xf32>
    %267 = vector.extract_strided_slice %259 {offsets = [0, 96], sizes = [8, 32], strides = [1, 1]} : vector<8x128xf32> to vector<8x32xf32>
    %268 = arith.mulf %261, %249 : vector<8x32xf32>
    %269 = arith.mulf %260, %266 : vector<8x32xf32>
    %270 = arith.addf %268, %269 : vector<8x32xf32>
    %271 = math.tanh %270 : vector<8x32xf32>
    %272 = arith.mulf %267, %271 : vector<8x32xf32>
    %c1_i32_109 = arith.constant 1 : i32
    %273 = arith.index_cast %c1_i32_109 : i32 to index
    %c0_110 = arith.constant 0 : index
    %c0_111 = arith.constant 0 : index
    %274 = vector.load %arg8[%273, %c0_110, %c0_111] : memref<8x8x128xf32, #tpu.memory_space<vmem>>, vector<1x8x128xf32>
    %275 = vector.shape_cast %274 : vector<1x8x128xf32> to vector<8x128xf32>
    %cst_112 = arith.constant dense<0.000000e+00> : vector<8x128xf32>
    %276 = tpu.matmul %272, %239, %cst_112 {dimension_numbers = #tpu.dot_dimension_numbers<[1], [0], [0], [1], [0, 0, 1, 1], [], []>} : vector<8x32xf32>, vector<32x128xf32>, vector<8x128xf32> -> vector<8x128xf32>
    %277 = arith.addf %275, %276 : vector<8x128xf32>
    %278 = arith.negf %277 : vector<8x128xf32>
    %279 = math.exp %278 : vector<8x128xf32>
    %cst_113 = arith.constant 1.000000e+00 : f32
    %280 = vector.broadcast %cst_113 : f32 to vector<8x128xf32>
    %281 = arith.addf %280, %279 : vector<8x128xf32>
    %282 = arith.divf %280, %281 : vector<8x128xf32>
    %283 = vector.extract_strided_slice %282 {offsets = [0, 0], sizes = [8, 32], strides = [1, 1]} : vector<8x128xf32> to vector<8x32xf32>
    %284 = vector.extract_strided_slice %282 {offsets = [0, 32], sizes = [8, 32], strides = [1, 1]} : vector<8x128xf32> to vector<8x32xf32>
    %285 = vector.extract_strided_slice %282 {offsets = [0, 64], sizes = [8, 32], strides = [1, 1]} : vector<8x128xf32> to vector<8x32xf32>
    %cst_114 = arith.constant 2.000000e+00 : f32
    %286 = vector.broadcast %cst_114 : f32 to vector<8x32xf32>
    %287 = arith.mulf %286, %285 : vector<8x32xf32>
    %cst_115 = arith.constant 1.000000e+00 : f32
    %288 = vector.broadcast %cst_115 : f32 to vector<8x32xf32>
    %289 = arith.subf %287, %288 : vector<8x32xf32>
    %290 = vector.extract_strided_slice %282 {offsets = [0, 96], sizes = [8, 32], strides = [1, 1]} : vector<8x128xf32> to vector<8x32xf32>
    %291 = arith.mulf %284, %270 : vector<8x32xf32>
    %292 = arith.mulf %283, %289 : vector<8x32xf32>
    %293 = arith.addf %291, %292 : vector<8x32xf32>
    %294 = math.tanh %293 : vector<8x32xf32>
    %295 = arith.mulf %290, %294 : vector<8x32xf32>
    %c2_i32_116 = arith.constant 2 : i32
    %296 = arith.index_cast %c2_i32_116 : i32 to index
    %c0_117 = arith.constant 0 : index
    %c0_118 = arith.constant 0 : index
    %297 = vector.load %arg8[%296, %c0_117, %c0_118] : memref<8x8x128xf32, #tpu.memory_space<vmem>>, vector<1x8x128xf32>
    %298 = vector.shape_cast %297 : vector<1x8x128xf32> to vector<8x128xf32>
    %cst_119 = arith.constant dense<0.000000e+00> : vector<8x128xf32>
    %299 = tpu.matmul %295, %239, %cst_119 {dimension_numbers = #tpu.dot_dimension_numbers<[1], [0], [0], [1], [0, 0, 1, 1], [], []>} : vector<8x32xf32>, vector<32x128xf32>, vector<8x128xf32> -> vector<8x128xf32>
    %300 = arith.addf %298, %299 : vector<8x128xf32>
    %301 = arith.negf %300 : vector<8x128xf32>
    %302 = math.exp %301 : vector<8x128xf32>
    %cst_120 = arith.constant 1.000000e+00 : f32
    %303 = vector.broadcast %cst_120 : f32 to vector<8x128xf32>
    %304 = arith.addf %303, %302 : vector<8x128xf32>
    %305 = arith.divf %303, %304 : vector<8x128xf32>
    %306 = vector.extract_strided_slice %305 {offsets = [0, 0], sizes = [8, 32], strides = [1, 1]} : vector<8x128xf32> to vector<8x32xf32>
    %307 = vector.extract_strided_slice %305 {offsets = [0, 32], sizes = [8, 32], strides = [1, 1]} : vector<8x128xf32> to vector<8x32xf32>
    %308 = vector.extract_strided_slice %305 {offsets = [0, 64], sizes = [8, 32], strides = [1, 1]} : vector<8x128xf32> to vector<8x32xf32>
    %cst_121 = arith.constant 2.000000e+00 : f32
    %309 = vector.broadcast %cst_121 : f32 to vector<8x32xf32>
    %310 = arith.mulf %309, %308 : vector<8x32xf32>
    %cst_122 = arith.constant 1.000000e+00 : f32
    %311 = vector.broadcast %cst_122 : f32 to vector<8x32xf32>
    %312 = arith.subf %310, %311 : vector<8x32xf32>
    %313 = vector.extract_strided_slice %305 {offsets = [0, 96], sizes = [8, 32], strides = [1, 1]} : vector<8x128xf32> to vector<8x32xf32>
    %314 = arith.mulf %307, %293 : vector<8x32xf32>
    %315 = arith.mulf %306, %312 : vector<8x32xf32>
    %316 = arith.addf %314, %315 : vector<8x32xf32>
    %317 = math.tanh %316 : vector<8x32xf32>
    %318 = arith.mulf %313, %317 : vector<8x32xf32>
    %c3_i32_123 = arith.constant 3 : i32
    %319 = arith.index_cast %c3_i32_123 : i32 to index
    %c0_124 = arith.constant 0 : index
    %c0_125 = arith.constant 0 : index
    %320 = vector.load %arg8[%319, %c0_124, %c0_125] : memref<8x8x128xf32, #tpu.memory_space<vmem>>, vector<1x8x128xf32>
    %321 = vector.shape_cast %320 : vector<1x8x128xf32> to vector<8x128xf32>
    %cst_126 = arith.constant dense<0.000000e+00> : vector<8x128xf32>
    %322 = tpu.matmul %318, %239, %cst_126 {dimension_numbers = #tpu.dot_dimension_numbers<[1], [0], [0], [1], [0, 0, 1, 1], [], []>} : vector<8x32xf32>, vector<32x128xf32>, vector<8x128xf32> -> vector<8x128xf32>
    %323 = arith.addf %321, %322 : vector<8x128xf32>
    %324 = arith.negf %323 : vector<8x128xf32>
    %325 = math.exp %324 : vector<8x128xf32>
    %cst_127 = arith.constant 1.000000e+00 : f32
    %326 = vector.broadcast %cst_127 : f32 to vector<8x128xf32>
    %327 = arith.addf %326, %325 : vector<8x128xf32>
    %328 = arith.divf %326, %327 : vector<8x128xf32>
    %329 = vector.extract_strided_slice %328 {offsets = [0, 0], sizes = [8, 32], strides = [1, 1]} : vector<8x128xf32> to vector<8x32xf32>
    %330 = vector.extract_strided_slice %328 {offsets = [0, 32], sizes = [8, 32], strides = [1, 1]} : vector<8x128xf32> to vector<8x32xf32>
    %331 = vector.extract_strided_slice %328 {offsets = [0, 64], sizes = [8, 32], strides = [1, 1]} : vector<8x128xf32> to vector<8x32xf32>
    %cst_128 = arith.constant 2.000000e+00 : f32
    %332 = vector.broadcast %cst_128 : f32 to vector<8x32xf32>
    %333 = arith.mulf %332, %331 : vector<8x32xf32>
    %cst_129 = arith.constant 1.000000e+00 : f32
    %334 = vector.broadcast %cst_129 : f32 to vector<8x32xf32>
    %335 = arith.subf %333, %334 : vector<8x32xf32>
    %336 = vector.extract_strided_slice %328 {offsets = [0, 96], sizes = [8, 32], strides = [1, 1]} : vector<8x128xf32> to vector<8x32xf32>
    %337 = arith.mulf %330, %316 : vector<8x32xf32>
    %338 = arith.mulf %329, %335 : vector<8x32xf32>
    %339 = arith.addf %337, %338 : vector<8x32xf32>
    %340 = math.tanh %339 : vector<8x32xf32>
    %341 = arith.mulf %336, %340 : vector<8x32xf32>
    %c4_i32_130 = arith.constant 4 : i32
    %342 = arith.index_cast %c4_i32_130 : i32 to index
    %c0_131 = arith.constant 0 : index
    %c0_132 = arith.constant 0 : index
    %343 = vector.load %arg8[%342, %c0_131, %c0_132] : memref<8x8x128xf32, #tpu.memory_space<vmem>>, vector<1x8x128xf32>
    %344 = vector.shape_cast %343 : vector<1x8x128xf32> to vector<8x128xf32>
    %cst_133 = arith.constant dense<0.000000e+00> : vector<8x128xf32>
    %345 = tpu.matmul %341, %239, %cst_133 {dimension_numbers = #tpu.dot_dimension_numbers<[1], [0], [0], [1], [0, 0, 1, 1], [], []>} : vector<8x32xf32>, vector<32x128xf32>, vector<8x128xf32> -> vector<8x128xf32>
    %346 = arith.addf %344, %345 : vector<8x128xf32>
    %347 = arith.negf %346 : vector<8x128xf32>
    %348 = math.exp %347 : vector<8x128xf32>
    %cst_134 = arith.constant 1.000000e+00 : f32
    %349 = vector.broadcast %cst_134 : f32 to vector<8x128xf32>
    %350 = arith.addf %349, %348 : vector<8x128xf32>
    %351 = arith.divf %349, %350 : vector<8x128xf32>
    %352 = vector.extract_strided_slice %351 {offsets = [0, 0], sizes = [8, 32], strides = [1, 1]} : vector<8x128xf32> to vector<8x32xf32>
    %353 = vector.extract_strided_slice %351 {offsets = [0, 32], sizes = [8, 32], strides = [1, 1]} : vector<8x128xf32> to vector<8x32xf32>
    %354 = vector.extract_strided_slice %351 {offsets = [0, 64], sizes = [8, 32], strides = [1, 1]} : vector<8x128xf32> to vector<8x32xf32>
    %cst_135 = arith.constant 2.000000e+00 : f32
    %355 = vector.broadcast %cst_135 : f32 to vector<8x32xf32>
    %356 = arith.mulf %355, %354 : vector<8x32xf32>
    %cst_136 = arith.constant 1.000000e+00 : f32
    %357 = vector.broadcast %cst_136 : f32 to vector<8x32xf32>
    %358 = arith.subf %356, %357 : vector<8x32xf32>
    %359 = vector.extract_strided_slice %351 {offsets = [0, 96], sizes = [8, 32], strides = [1, 1]} : vector<8x128xf32> to vector<8x32xf32>
    %360 = arith.mulf %353, %339 : vector<8x32xf32>
    %361 = arith.mulf %352, %358 : vector<8x32xf32>
    %362 = arith.addf %360, %361 : vector<8x32xf32>
    %363 = math.tanh %362 : vector<8x32xf32>
    %364 = arith.mulf %359, %363 : vector<8x32xf32>
    %c5_i32_137 = arith.constant 5 : i32
    %365 = arith.index_cast %c5_i32_137 : i32 to index
    %c0_138 = arith.constant 0 : index
    %c0_139 = arith.constant 0 : index
    %366 = vector.load %arg8[%365, %c0_138, %c0_139] : memref<8x8x128xf32, #tpu.memory_space<vmem>>, vector<1x8x128xf32>
    %367 = vector.shape_cast %366 : vector<1x8x128xf32> to vector<8x128xf32>
    %cst_140 = arith.constant dense<0.000000e+00> : vector<8x128xf32>
    %368 = tpu.matmul %364, %239, %cst_140 {dimension_numbers = #tpu.dot_dimension_numbers<[1], [0], [0], [1], [0, 0, 1, 1], [], []>} : vector<8x32xf32>, vector<32x128xf32>, vector<8x128xf32> -> vector<8x128xf32>
    %369 = arith.addf %367, %368 : vector<8x128xf32>
    %370 = arith.negf %369 : vector<8x128xf32>
    %371 = math.exp %370 : vector<8x128xf32>
    %cst_141 = arith.constant 1.000000e+00 : f32
    %372 = vector.broadcast %cst_141 : f32 to vector<8x128xf32>
    %373 = arith.addf %372, %371 : vector<8x128xf32>
    %374 = arith.divf %372, %373 : vector<8x128xf32>
    %375 = vector.extract_strided_slice %374 {offsets = [0, 0], sizes = [8, 32], strides = [1, 1]} : vector<8x128xf32> to vector<8x32xf32>
    %376 = vector.extract_strided_slice %374 {offsets = [0, 32], sizes = [8, 32], strides = [1, 1]} : vector<8x128xf32> to vector<8x32xf32>
    %377 = vector.extract_strided_slice %374 {offsets = [0, 64], sizes = [8, 32], strides = [1, 1]} : vector<8x128xf32> to vector<8x32xf32>
    %cst_142 = arith.constant 2.000000e+00 : f32
    %378 = vector.broadcast %cst_142 : f32 to vector<8x32xf32>
    %379 = arith.mulf %378, %377 : vector<8x32xf32>
    %cst_143 = arith.constant 1.000000e+00 : f32
    %380 = vector.broadcast %cst_143 : f32 to vector<8x32xf32>
    %381 = arith.subf %379, %380 : vector<8x32xf32>
    %382 = vector.extract_strided_slice %374 {offsets = [0, 96], sizes = [8, 32], strides = [1, 1]} : vector<8x128xf32> to vector<8x32xf32>
    %383 = arith.mulf %376, %362 : vector<8x32xf32>
    %384 = arith.mulf %375, %381 : vector<8x32xf32>
    %385 = arith.addf %383, %384 : vector<8x32xf32>
    %386 = math.tanh %385 : vector<8x32xf32>
    %387 = arith.mulf %382, %386 : vector<8x32xf32>
    %c6_i32_144 = arith.constant 6 : i32
    %388 = arith.index_cast %c6_i32_144 : i32 to index
    %c0_145 = arith.constant 0 : index
    %c0_146 = arith.constant 0 : index
    %389 = vector.load %arg8[%388, %c0_145, %c0_146] : memref<8x8x128xf32, #tpu.memory_space<vmem>>, vector<1x8x128xf32>
    %390 = vector.shape_cast %389 : vector<1x8x128xf32> to vector<8x128xf32>
    %cst_147 = arith.constant dense<0.000000e+00> : vector<8x128xf32>
    %391 = tpu.matmul %387, %239, %cst_147 {dimension_numbers = #tpu.dot_dimension_numbers<[1], [0], [0], [1], [0, 0, 1, 1], [], []>} : vector<8x32xf32>, vector<32x128xf32>, vector<8x128xf32> -> vector<8x128xf32>
    %392 = arith.addf %390, %391 : vector<8x128xf32>
    %393 = arith.negf %392 : vector<8x128xf32>
    %394 = math.exp %393 : vector<8x128xf32>
    %cst_148 = arith.constant 1.000000e+00 : f32
    %395 = vector.broadcast %cst_148 : f32 to vector<8x128xf32>
    %396 = arith.addf %395, %394 : vector<8x128xf32>
    %397 = arith.divf %395, %396 : vector<8x128xf32>
    %398 = vector.extract_strided_slice %397 {offsets = [0, 0], sizes = [8, 32], strides = [1, 1]} : vector<8x128xf32> to vector<8x32xf32>
    %399 = vector.extract_strided_slice %397 {offsets = [0, 32], sizes = [8, 32], strides = [1, 1]} : vector<8x128xf32> to vector<8x32xf32>
    %400 = vector.extract_strided_slice %397 {offsets = [0, 64], sizes = [8, 32], strides = [1, 1]} : vector<8x128xf32> to vector<8x32xf32>
    %cst_149 = arith.constant 2.000000e+00 : f32
    %401 = vector.broadcast %cst_149 : f32 to vector<8x32xf32>
    %402 = arith.mulf %401, %400 : vector<8x32xf32>
    %cst_150 = arith.constant 1.000000e+00 : f32
    %403 = vector.broadcast %cst_150 : f32 to vector<8x32xf32>
    %404 = arith.subf %402, %403 : vector<8x32xf32>
    %405 = vector.extract_strided_slice %397 {offsets = [0, 96], sizes = [8, 32], strides = [1, 1]} : vector<8x128xf32> to vector<8x32xf32>
    %406 = arith.mulf %399, %385 : vector<8x32xf32>
    %407 = arith.mulf %398, %404 : vector<8x32xf32>
    %408 = arith.addf %406, %407 : vector<8x32xf32>
    %409 = math.tanh %408 : vector<8x32xf32>
    %410 = arith.mulf %405, %409 : vector<8x32xf32>
    %c7_i32_151 = arith.constant 7 : i32
    %411 = arith.index_cast %c7_i32_151 : i32 to index
    %c0_152 = arith.constant 0 : index
    %c0_153 = arith.constant 0 : index
    %412 = vector.load %arg8[%411, %c0_152, %c0_153] : memref<8x8x128xf32, #tpu.memory_space<vmem>>, vector<1x8x128xf32>
    %413 = vector.shape_cast %412 : vector<1x8x128xf32> to vector<8x128xf32>
    %cst_154 = arith.constant dense<0.000000e+00> : vector<8x128xf32>
    %414 = tpu.matmul %410, %239, %cst_154 {dimension_numbers = #tpu.dot_dimension_numbers<[1], [0], [0], [1], [0, 0, 1, 1], [], []>} : vector<8x32xf32>, vector<32x128xf32>, vector<8x128xf32> -> vector<8x128xf32>
    %415 = arith.addf %413, %414 : vector<8x128xf32>
    %416 = arith.negf %415 : vector<8x128xf32>
    %417 = math.exp %416 : vector<8x128xf32>
    %cst_155 = arith.constant 1.000000e+00 : f32
    %418 = vector.broadcast %cst_155 : f32 to vector<8x128xf32>
    %419 = arith.addf %418, %417 : vector<8x128xf32>
    %420 = arith.divf %418, %419 : vector<8x128xf32>
    %421 = vector.extract_strided_slice %420 {offsets = [0, 0], sizes = [8, 32], strides = [1, 1]} : vector<8x128xf32> to vector<8x32xf32>
    %422 = vector.extract_strided_slice %420 {offsets = [0, 32], sizes = [8, 32], strides = [1, 1]} : vector<8x128xf32> to vector<8x32xf32>
    %423 = vector.extract_strided_slice %420 {offsets = [0, 64], sizes = [8, 32], strides = [1, 1]} : vector<8x128xf32> to vector<8x32xf32>
    %cst_156 = arith.constant 2.000000e+00 : f32
    %424 = vector.broadcast %cst_156 : f32 to vector<8x32xf32>
    %425 = arith.mulf %424, %423 : vector<8x32xf32>
    %cst_157 = arith.constant 1.000000e+00 : f32
    %426 = vector.broadcast %cst_157 : f32 to vector<8x32xf32>
    %427 = arith.subf %425, %426 : vector<8x32xf32>
    %428 = vector.extract_strided_slice %420 {offsets = [0, 96], sizes = [8, 32], strides = [1, 1]} : vector<8x128xf32> to vector<8x32xf32>
    %429 = arith.mulf %422, %408 : vector<8x32xf32>
    %430 = arith.mulf %421, %427 : vector<8x32xf32>
    %431 = arith.addf %429, %430 : vector<8x32xf32>
    %432 = math.tanh %431 : vector<8x32xf32>
    %433 = arith.mulf %428, %432 : vector<8x32xf32>
    %c8_i32_158 = arith.constant 8 : i32
    %c1_159 = arith.constant 1 : index
    %c0_160 = arith.constant 0 : index
    %c0_161 = arith.constant 0 : index
    %434 = vector.load %arg6[%c1_159, %c0_160, %c0_161] : memref<2x8x32xf32, #tpu.memory_space<vmem>>, vector<1x8x32xf32>
    %435 = vector.shape_cast %434 : vector<1x8x32xf32> to vector<8x32xf32>
    %436 = vector.shape_cast %433 : vector<8x32xf32> to vector<1x8x32xf32>
    tpu.vector_store %arg6[%c1_159, %c0_160, %c0_161], %436 {strides = array<i32>} : memref<2x8x32xf32, #tpu.memory_space<vmem>>, vector<1x8x32xf32>,
    %c1_162 = arith.constant 1 : index
    %c0_163 = arith.constant 0 : index
    %c0_164 = arith.constant 0 : index
    %437 = vector.load %arg7[%c1_162, %c0_163, %c0_164] : memref<2x8x32xf32, #tpu.memory_space<vmem>>, vector<1x8x32xf32>
    %438 = vector.shape_cast %437 : vector<1x8x32xf32> to vector<8x32xf32>
    %439 = vector.shape_cast %431 : vector<8x32xf32> to vector<1x8x32xf32>
    tpu.vector_store %arg7[%c1_162, %c0_163, %c0_164], %439 {strides = array<i32>} : memref<2x8x32xf32, #tpu.memory_space<vmem>>, vector<1x8x32xf32>,
    %cst_165 = arith.constant 0.000000e+00 : f32
    %440 = vector.broadcast %cst_165 : f32 to vector<8x32xf32>
    %441 = arith.maximumf %433, %440 : vector<8x32xf32>
    %c2 = arith.constant 2 : index
    %c0_166 = arith.constant 0 : index
    %442 = vector.load %arg2[%c2, %c0_166] : memref<3x128xf32, #tpu.memory_space<vmem>>, vector<1x32xf32>
    %c2_167 = arith.constant 2 : index
    %c32 = arith.constant 32 : index
    %443 = vector.load %arg2[%c2_167, %c32] : memref<3x128xf32, #tpu.memory_space<vmem>>, vector<1x1xf32>
    %444 = vector.broadcast %442 : vector<1x32xf32> to vector<8x32xf32>
    %445 = arith.mulf %441, %444 : vector<8x32xf32>
    %cst_168 = arith.constant dense<0.000000e+00> : vector<8xf32>
    %446 = vector.multi_reduction <add>, %445, %cst_168 [1] : vector<8x32xf32> to vector<8xf32>
    %447 = vector.shape_cast %446 : vector<8xf32> to vector<8x1xf32>
    %448 = vector.broadcast %443 : vector<1x1xf32> to vector<8x1xf32>
    %449 = arith.addf %447, %448 : vector<8x1xf32>
    %c0_169 = arith.constant 0 : index
    %c0_170 = arith.constant 0 : index
    %450 = vector.load %arg5[%c0_169, %c0_170] : memref<8x1xf32, #tpu.memory_space<vmem>>, vector<8x1xf32>
    tpu.vector_store %arg5[%c0_169, %c0_170], %449 {strides = array<i32>} : memref<8x1xf32, #tpu.memory_space<vmem>>, vector<8x1xf32>,
    return
  }
}

</mosaic_0001>

<llo_original>
// kernel: lstmnet_forward.1
$region0: #{lstmnet_forward.1}
  #allocation0 [shape = 'u32[]', space=smem, size = 0x4, offset = 0x4, fixed_abs, tag = 'smem constant byte address 0x4 - core index']
  #allocation1 [shape = 'u32[144,128]{1,0:T(1,128)}', space=vmem, size = 0x12000, scoped, tag = 'internal scratch']
  #allocation2 [shape = 'f32[8,8,128]{2,1,0:T(8,128)}', space=vmem, size = 0x8000, scoped, tag = 'scratch operand']
  #allocation3 [shape = 'f32[8,8,32]{2,1,0:T(8,128)}', space=vmem, size = 0x8000, scoped, tag = 'scratch operand']
  %s0 = inlined_call_operand.vmem [shape: f32[8,8,8], index: 0, kind: input, shape index: {}]
  %s1 = inlined_call_operand.vmem [shape: f32[104,128], index: 1, kind: input, shape index: {}]
  %s2 = inlined_call_operand.vmem [shape: f32[3,128], index: 2, kind: input, shape index: {}]
  %s3 = inlined_call_operand.vmem [shape: f32[2,8,32], index: 3, kind: input, shape index: {}]
  %s4 = inlined_call_operand.hbm [shape: f32[2,8,32], index: 4, kind: input, shape index: {}]
  %s5 = inlined_call_operand.vmem [shape: f32[8,1], index: 5, kind: output, shape index: {0}]
  %s6 = inlined_call_operand.hbm [shape: f32[2,8,32], index: 6, kind: output, shape index: {1}]
  %s7 = inlined_call_operand.hbm [shape: f32[2,8,32], index: 7, kind: output, shape index: {2}]
  %8 = xla_tuple %s5, %s6, %s7
  %s9 = sld [smem:[#allocation0]]
  $region50: #{lstmnet_forward.1} parent=0
    _
  %s11 = ssub.s32 1, %s9
  %s12 = scalar_select 0, %s11, %s9
  $region1: #{lstmnet_forward.1} parent=0
    #allocation4 [shape = 'u8[8192]{0}', space=vmem, size = 0x2000, scoped, tag = 'input window, operand 4, single buffered']
    #allocation5 [shape = 's32[1]{0}', space=sflag, size = 0x4, scoped, tag = 'scoped memory for lstmnet_forward.1']
    #allocation6 [shape = 's32[1]{0}', space=sflag, size = 0x4, scoped, tag = 'scoped memory for lstmnet_forward.1']
    #allocation7 [shape = 'u8[8192]{0}', space=vmem, size = 0x2000, scoped, tag = 'output window, operand 1, single buffered']
    #allocation8 [shape = 'u8[8192]{0}', space=vmem, size = 0x2000, scoped, tag = 'output window, operand 2, single buffered']
    #allocation9 [shape = 's32[1]{0}', space=sflag, size = 0x4, scoped, tag = 'scoped memory for lstmnet_forward.1']
    %13 = vsyncpa [#allocation5], 0
    %14 = vsyncpa [#allocation6], 0
    %15 = vsyncpa [#allocation9], 0
    // Predicated region
    $region2: #{lstmnet_forward.1} parent=1 // pred_check
      _
    $region3: #{lstmnet_forward.1} parent=1 // pred_check_branch
      %17 = sbr.rel (0) target = $region5
    $region4: #{lstmnet_forward.1} parent=1 // pred_region
      _
    $region5: #{lstmnet_forward.1} parent=1 // pred_fallthru
      _
    // Predicated region
    $region6: #{lstmnet_forward.1} parent=1 // pred_check
      _
    $region7: #{lstmnet_forward.1} parent=1 // pred_check_branch
      %19 = sbr.rel (0) target = $region9
    $region8: #{lstmnet_forward.1} parent=1 // pred_region
      _
    $region9: #{lstmnet_forward.1} parent=1 // pred_fallthru
      _
    // Predicated region
    $region10: #{lstmnet_forward.1} parent=1 // pred_check
      _
    $region11: #{lstmnet_forward.1} parent=1 // pred_check_branch
      %21 = sbr.rel (0) target = $region13
    $region12: #{lstmnet_forward.1} parent=1 // pred_region
      _
    $region13: #{lstmnet_forward.1} parent=1 // pred_fallthru
      _
    // Predicated region
    $region14: #{lstmnet_forward.1} parent=1 // pred_check
      _
    $region15: #{lstmnet_forward.1} parent=1 // pred_check_branch
      %23 = sbr.rel (0) target = $region17
    $region16: #{lstmnet_forward.1} parent=1 // pred_region
      _
    $region17: #{lstmnet_forward.1} parent=1 // pred_fallthru
      _
    // Predicated region
    $region18: #{lstmnet_forward.1} parent=1 // pred_check
      _
    $region19: #{lstmnet_forward.1} parent=1 // pred_check_branch
      %25 = sbr.rel (0) target = $region21
    $region20: #{lstmnet_forward.1} parent=1 // pred_region
      %s27 = ssub.s32 256, 256
      %28 = vsyncadd [#allocation5], %s27
      %s29 = sshll.u32 [#allocation4], 4
      %s30 = int_to_ptr.vmem [resolvable:$true] %s29
      %35 = dma.hbm_to_vmem [thread:$0]  %s4, 256, %s30, [#allocation5], 128, 128, 8
    $region21: #{lstmnet_forward.1} parent=1 // pred_fallthru
      _
    // Predicated region
    $region22: #{lstmnet_forward.1} parent=1 // pred_check
      _
    $region23: #{lstmnet_forward.1} parent=1 // pred_check_branch
      %37 = sbr.rel (0) target = $region25
    $region24: #{lstmnet_forward.1} parent=1 // pred_region
      %38 = dma.done [#allocation5], 256
    $region25: #{lstmnet_forward.1} parent=1 // pred_fallthru
      _
    %v39 = vld [vmem:[%s0] sm:$0xff]
    %v40 = vld [vmem:[%s0 + $0x8] sm:$0xff]
    %v41 = vld [vmem:[%s0 + $0x10] sm:$0xff]
    %v42 = vld [vmem:[%s0 + $0x18] sm:$0xff]
    %v43 = vld [vmem:[%s0 + $0x20] sm:$0xff]
    %v44 = vld [vmem:[%s0 + $0x28] sm:$0xff]
    %v45 = vld [vmem:[%s0 + $0x30] sm:$0xff]
    %v46 = vld [vmem:[%s0 + $0x38] sm:$0xff]
    %v47 = vld [vmem:[%s1] sm:$0xff]
    %v48 = vld [vmem:[%s1 + $0x8] sm:$0xff]
    %v49 = vld [vmem:[%s1 + $0x10] sm:$0xff]
    %v50 = vld [vmem:[%s1 + $0x18] sm:$0xff]
    %v51 = vld [vmem:[%s1 + $0x20] sm:$0xff]
    %v52 = vld [vmem:[%s2] sm:$0x1]
    %v53 = vlaneseq
    %v54 = vshrl.u32 %v53, 7
    %v55 = vsub.s32 0, %v54
    %v56 = vrot.slane %v52, %v55
    %vm57 = vcmask 64512
    %v59 = vsel %vm57, %v39, 0
    %v62 = vsel %vm57, %v40, 0
    %v65 = vsel %vm57, %v41, 0
    %v68 = vsel %vm57, %v42, 0
    %v71 = vsel %vm57, %v43, 0
    %v74 = vsel %vm57, %v44, 0
    %v77 = vsel %vm57, %v45, 0
    %v80 = vsel %vm57, %v46, 0
    %82 = vmatprep.subr.mxu0 0.0
    %83 = vmatpush1.msra.mxu0 0.0
    %84 = vmatprep.subr.mxu0 0.0
    %85 = vmatpush1.msra.mxu0 0.0
    %86 = vmatprep.subr.mxu0 0.0
    %87 = vmatpush1.msra.mxu0 0.0
    %88 = vmatprep.subr.mxu0 0.0
    %89 = vmatpush1.msra.mxu0 0.0
    %90 = vmatprep.subr.mxu0 0.0
    %91 = vmatpush1.msra.mxu0 0.0
    %92 = vmatprep.subr.mxu0 0.0
    %93 = vmatpush1.msra.mxu0 0.0
    %94 = vmatprep.subr.mxu0 0.0
    %95 = vmatpush1.msra.mxu0 0.0
    %96 = vmatprep.subr.mxu0 0.0
    %97 = vmatpush1.msra.mxu0 0.0
    %98 = vmatprep.subr.mxu0 0.0
    %99 = vmatpush1.msra.mxu0 0.0
    %100 = vmatprep.subr.mxu0 0.0
    %101 = vmatpush1.msra.mxu0 0.0
    %102 = vmatprep.subr.mxu0 0.0
    %103 = vmatpush1.msra.mxu0 0.0
    %104 = vmatprep.subr.mxu0 0.0
    %105 = vmatpush1.msra.mxu0 0.0
    %106 = vmatprep.subr.mxu0 0.0
    %107 = vmatpush1.msra.mxu0 0.0
    %108 = vmatprep.subr.mxu0 0.0
    %109 = vmatpush1.msra.mxu0 0.0
    %110 = vmatprep.subr.mxu0 0.0
    %111 = vmatpush1.msra.mxu0 0.0
    %112 = vmatprep.subr.mxu0 0.0
    %113 = vmatpush1.msra.mxu0 %v47
    %114 = vmatprep.subr.mxu0 0.0
    %115 = vmatpush2.msra.mxu0 0.0
    %116 = vmatprep.subr.mxu0 0.0
    %117 = vmatpush2.msra.mxu0 0.0
    %118 = vmatprep.subr.mxu0 0.0
    %119 = vmatpush2.msra.mxu0 0.0
    %120 = vmatprep.subr.mxu0 0.0
    %121 = vmatpush2.msra.mxu0 0.0
    %122 = vmatprep.subr.mxu0 0.0
    %123 = vmatpush2.msra.mxu0 0.0
    %124 = vmatprep.subr.mxu0 0.0
    %125 = vmatpush2.msra.mxu0 0.0
    %126 = vmatprep.subr.mxu0 0.0
    %127 = vmatpush2.msra.mxu0 0.0
    %128 = vmatprep.subr.mxu0 0.0
    %129 = vmatpush2.msra.mxu0 0.0
    %130 = vmatprep.subr.mxu0 0.0
    %131 = vmatpush2.msra.mxu0 0.0
    %132 = vmatprep.subr.mxu0 0.0
    %133 = vmatpush2.msra.mxu0 0.0
    %134 = vmatprep.subr.mxu0 0.0
    %135 = vmatpush2.msra.mxu0 0.0
    %136 = vmatprep.subr.mxu0 0.0
    %137 = vmatpush2.msra.mxu0 0.0
    %138 = vmatprep.subr.mxu0 0.0
    %139 = vmatpush2.msra.mxu0 0.0
    %140 = vmatprep.subr.mxu0 0.0
    %141 = vmatpush2.msra.mxu0 0.0
    %142 = vmatprep.subr.mxu0 0.0
    %143 = vmatpush2.msra.mxu0 0.0
    %144 = vmatprep.subr.mxu0 0.0
    %145 = vmatpush2.msra.mxu0 0.0
    %146 = vmatprep.mubr.f32.mxu0 0.0
    %147 = vmatmul.mubr.f32.gmra.mxu0 %v59
    %v148 = vpop.f32.mrf.mxu0
    %v149 = vadd.f32 %v56, %v148
    %v150 = vpop.f32.mrf.mxu0
    %151 = vmatprep.mubr.f32.mxu0 0.0
    %152 = vmatmul.mubr.f32.gmra.mxu0 %v62
    %v153 = vpop.f32.mrf.mxu0
    %v154 = vadd.f32 %v56, %v153
    %v155 = vpop.f32.mrf.mxu0
    %156 = vmatprep.mubr.f32.mxu0 0.0
    %157 = vmatmul.mubr.f32.gmra.mxu0 %v65
    %v158 = vpop.f32.mrf.mxu0
    %v159 = vadd.f32 %v56, %v158
    %v160 = vpop.f32.mrf.mxu0
    %161 = vmatprep.mubr.f32.mxu0 0.0
    %162 = vmatmul.mubr.f32.gmra.mxu0 %v68
    %v163 = vpop.f32.mrf.mxu0
    %v164 = vadd.f32 %v56, %v163
    %v165 = vpop.f32.mrf.mxu0
    %166 = vmatprep.mubr.f32.mxu0 0.0
    %167 = vmatmul.mubr.f32.gmra.mxu0 %v71
    %v168 = vpop.f32.mrf.mxu0
    %v169 = vadd.f32 %v56, %v168
    %v170 = vpop.f32.mrf.mxu0
    %171 = vmatprep.mubr.f32.mxu0 0.0
    %172 = vmatmul.mubr.f32.gmra.mxu0 %v74
    %v173 = vpop.f32.mrf.mxu0
    %v174 = vadd.f32 %v56, %v173
    %v175 = vpop.f32.mrf.mxu0
    %176 = vmatprep.mubr.f32.mxu0 0.0
    %177 = vmatmul.mubr.f32.gmra.mxu0 %v77
    %v178 = vpop.f32.mrf.mxu0
    %v179 = vadd.f32 %v56, %v178
    %v180 = vpop.f32.mrf.mxu0
    %181 = vmatprep.mubr.f32.mxu0 0.0
    %182 = vmatmul.mubr.f32.gmra.mxu0 %v80
    %v183 = vpop.f32.mrf.mxu0
    %v184 = vadd.f32 %v56, %v183
    %v185 = vpop.f32.mrf.mxu0
    %186 = vdwg.mxu0
    %187 = vst [vmem:[#allocation2] sm:$0xff] %v149
    %188 = vst [vmem:[#allocation2 + $0x8] sm:$0xff] %v154
    %189 = vst [vmem:[#allocation2 + $0x10] sm:$0xff] %v159
    %190 = vst [vmem:[#allocation2 + $0x18] sm:$0xff] %v164
    %191 = vst [vmem:[#allocation2 + $0x20] sm:$0xff] %v169
    %192 = vst [vmem:[#allocation2 + $0x28] sm:$0xff] %v174
    %193 = vst [vmem:[#allocation2 + $0x30] sm:$0xff] %v179
    %194 = vst [vmem:[#allocation2 + $0x38] sm:$0xff] %v184
    %v195 = vld [vmem:[%s3] sm:$0xff]
    %v196 = vld [vmem:[#allocation4] sm:$0xff]
    %v197 = vld [vmem:[#allocation2] sm:$0xff]
    %vm198 = vcmask 261120
    %v200 = vsel %vm198, %v195, 0
    %202 = vmatprep.subr.mxu0 0.0
    %203 = vmatpush1.msra.mxu0 0.0
    %204 = vmatprep.subr.mxu0 0.0
    %205 = vmatpush1.msra.mxu0 0.0
    %206 = vmatprep.subr.mxu0 0.0
    %207 = vmatpush1.msra.mxu0 0.0
    %208 = vmatprep.subr.mxu0 0.0
    %209 = vmatpush1.msra.mxu0 0.0
    %210 = vmatprep.subr.mxu0 0.0
    %211 = vmatpush1.msra.mxu0 0.0
    %212 = vmatprep.subr.mxu0 0.0
    %213 = vmatpush1.msra.mxu0 0.0
    %214 = vmatprep.subr.mxu0 0.0
    %215 = vmatpush1.msra.mxu0 0.0
    %216 = vmatprep.subr.mxu0 0.0
    %217 = vmatpush1.msra.mxu0 0.0
    %218 = vmatprep.subr.mxu0 0.0
    %219 = vmatpush1.msra.mxu0 0.0
    %220 = vmatprep.subr.mxu0 0.0
    %221 = vmatpush1.msra.mxu0 0.0
    %222 = vmatprep.subr.mxu0 0.0
    %223 = vmatpush1.msra.mxu0 0.0
    %224 = vmatprep.subr.mxu0 0.0
    %225 = vmatpush1.msra.mxu0 0.0
    %226 = vmatprep.subr.mxu0 0.0
    %227 = vmatpush1.msra.mxu0 %v51
    %228 = vmatprep.subr.mxu0 0.0
    %229 = vmatpush1.msra.mxu0 %v50
    %230 = vmatprep.subr.mxu0 0.0
    %231 = vmatpush1.msra.mxu0 %v49
    %232 = vmatprep.subr.mxu0 0.0
    %233 = vmatpush1.msra.mxu0 %v48
    %234 = vmatprep.subr.mxu0 0.0
    %235 = vmatpush2.msra.mxu0 0.0
    %236 = vmatprep.subr.mxu0 0.0
    %237 = vmatpush2.msra.mxu0 0.0
    %238 = vmatprep.subr.mxu0 0.0
    %239 = vmatpush2.msra.mxu0 0.0
    %240 = vmatprep.subr.mxu0 0.0
    %241 = vmatpush2.msra.mxu0 0.0
    %242 = vmatprep.subr.mxu0 0.0
    %243 = vmatpush2.msra.mxu0 0.0
    %244 = vmatprep.subr.mxu0 0.0
    %245 = vmatpush2.msra.mxu0 0.0
    %246 = vmatprep.subr.mxu0 0.0
    %247 = vmatpush2.msra.mxu0 0.0
    %248 = vmatprep.subr.mxu0 0.0
    %249 = vmatpush2.msra.mxu0 0.0
    %250 = vmatprep.subr.mxu0 0.0
    %251 = vmatpush2.msra.mxu0 0.0
    %252 = vmatprep.subr.mxu0 0.0
    %253 = vmatpush2.msra.mxu0 0.0
    %254 = vmatprep.subr.mxu0 0.0
    %255 = vmatpush2.msra.mxu0 0.0
    %256 = vmatprep.subr.mxu0 0.0
    %257 = vmatpush2.msra.mxu0 0.0
    %258 = vmatprep.subr.mxu0 0.0
    %259 = vmatpush2.msra.mxu0 0.0
    %260 = vmatprep.subr.mxu0 0.0
    %261 = vmatpush2.msra.mxu0 0.0
    %262 = vmatprep.subr.mxu0 0.0
    %263 = vmatpush2.msra.mxu0 0.0
    %264 = vmatprep.subr.mxu0 0.0
    %265 = vmatpush2.msra.mxu0 0.0
    %266 = vmatprep.mubr.f32.mxu0 0.0
    %267 = vmatmul.mubr.f32.gmra.mxu0 %v200
    %v268 = vpop.f32.mrf.mxu0
    %v269 = vadd.f32 0.0, %v268
    %v270 = vpop.f32.mrf.mxu0
    %271 = vdwg.mxu0
    %v272 = vadd.f32 %v197, %v269
    %v273 = vxor.u32 %v272, 2147483648
    %v274 = vmul.f32 %v273, 1.442695
    %v275 = vpow.pop %v274
    %v276 = vadd.f32 %v275, 1.0
    %v277 = vrcp.pop %v276
    %v278 = vmul.f32 1.0, %v277
    %v279 = vmul.f32 %v278, 2.0
    %v280 = vsub.f32 %v279, 1.0
    %282 = vrot.lane.b32.xlu0 %v196, 32
    %v283 = vpop.permute.xlu0 %282
    %v285 = vmul.f32 %v278, %v283
    %287 = vrot.lane.b32.xlu0 %v280, 64
    %v288 = vpop.permute.xlu0 %287
    %v290 = vmul.f32 %v278, %v288
    %292 = vrot.lane.b32.xlu0 %v290, 32
    %v293 = vpop.permute.xlu0 %292
    %v295 = vadd.f32 %v285, %v293
    %v296 = vtanh.pop %v295
    %298 = vrot.lane.b32.xlu0 %v296, 64
    %v299 = vpop.permute.xlu0 %298
    %v301 = vmul.f32 %v278, %v299
    %303 = vrot.lane.b32.xlu0 %v301, 32
    %v304 = vpop.permute.xlu0 %303
    %306 = vst.msk [vmem:[#allocation3] sm:$0xff] %vm198, %v304
    %s307 = scalar_lea.vmem [#allocation2], 8
    %v308 = vld [vmem:[%s307] sm:$0xff]
    %v309 = vsel %vm198, %v304, 0
    %311 = vmatprep.subr.mxu0 0.0
    %312 = vmatpush1.msra.mxu0 0.0
    %313 = vmatprep.subr.mxu0 0.0
    %314 = vmatpush1.msra.mxu0 0.0
    %315 = vmatprep.subr.mxu0 0.0
    %316 = vmatpush1.msra.mxu0 0.0
    %317 = vmatprep.subr.mxu0 0.0
    %318 = vmatpush1.msra.mxu0 0.0
    %319 = vmatprep.subr.mxu0 0.0
    %320 = vmatpush1.msra.mxu0 0.0
    %321 = vmatprep.subr.mxu0 0.0
    %322 = vmatpush1.msra.mxu0 0.0
    %323 = vmatprep.subr.mxu0 0.0
    %324 = vmatpush1.msra.mxu0 0.0
    %325 = vmatprep.subr.mxu0 0.0
    %326 = vmatpush1.msra.mxu0 0.0
    %327 = vmatprep.subr.mxu0 0.0
    %328 = vmatpush1.msra.mxu0 0.0
    %329 = vmatprep.subr.mxu0 0.0
    %330 = vmatpush1.msra.mxu0 0.0
    %331 = vmatprep.subr.mxu0 0.0
    %332 = vmatpush1.msra.mxu0 0.0
    %333 = vmatprep.subr.mxu0 0.0
    %334 = vmatpush1.msra.mxu0 0.0
    %335 = vmatprep.subr.mxu0 0.0
    %336 = vmatpush1.msra.mxu0 %v51
    %337 = vmatprep.subr.mxu0 0.0
    %338 = vmatpush1.msra.mxu0 %v50
    %339 = vmatprep.subr.mxu0 0.0
    %340 = vmatpush1.msra.mxu0 %v49
    %341 = vmatprep.subr.mxu0 0.0
    %342 = vmatpush1.msra.mxu0 %v48
    %343 = vmatprep.subr.mxu0 0.0
    %344 = vmatpush2.msra.mxu0 0.0
    %345 = vmatprep.subr.mxu0 0.0
    %346 = vmatpush2.msra.mxu0 0.0
    %347 = vmatprep.subr.mxu0 0.0
    %348 = vmatpush2.msra.mxu0 0.0
    %349 = vmatprep.subr.mxu0 0.0
    %350 = vmatpush2.msra.mxu0 0.0
    %351 = vmatprep.subr.mxu0 0.0
    %352 = vmatpush2.msra.mxu0 0.0
    %353 = vmatprep.subr.mxu0 0.0
    %354 = vmatpush2.msra.mxu0 0.0
    %355 = vmatprep.subr.mxu0 0.0
    %356 = vmatpush2.msra.mxu0 0.0
    %357 = vmatprep.subr.mxu0 0.0
    %358 = vmatpush2.msra.mxu0 0.0
    %359 = vmatprep.subr.mxu0 0.0
    %360 = vmatpush2.msra.mxu0 0.0
    %361 = vmatprep.subr.mxu0 0.0
    %362 = vmatpush2.msra.mxu0 0.0
    %363 = vmatprep.subr.mxu0 0.0
    %364 = vmatpush2.msra.mxu0 0.0
    %365 = vmatprep.subr.mxu0 0.0
    %366 = vmatpush2.msra.mxu0 0.0
    %367 = vmatprep.subr.mxu0 0.0
    %368 = vmatpush2.msra.mxu0 0.0
    %369 = vmatprep.subr.mxu0 0.0
    %370 = vmatpush2.msra.mxu0 0.0
    %371 = vmatprep.subr.mxu0 0.0
    %372 = vmatpush2.msra.mxu0 0.0
    %373 = vmatprep.subr.mxu0 0.0
    %374 = vmatpush2.msra.mxu0 0.0
    %375 = vmatprep.mubr.f32.mxu0 0.0
    %376 = vmatmul.mubr.f32.gmra.mxu0 %v309
    %v377 = vpop.f32.mrf.mxu0
    %v378 = vadd.f32 0.0, %v377
    %v379 = vpop.f32.mrf.mxu0
    %380 = vdwg.mxu0
    %v381 = vadd.f32 %v308, %v378
    %v382 = vxor.u32 %v381, 2147483648
    %v383 = vmul.f32 %v382, 1.442695
    %v384 = vpow.pop %v383
    %v385 = vadd.f32 %v384, 1.0
    %v386 = vrcp.pop %v385
    %v387 = vmul.f32 1.0, %v386
    %v388 = vmul.f32 %v387, 2.0
    %v389 = vsub.f32 %v388, 1.0
    %v390 = vmul.f32 %v387, %v295
    %392 = vrot.lane.b32.xlu0 %v389, 64
    %v393 = vpop.permute.xlu0 %392
    %v395 = vmul.f32 %v387, %v393
    %397 = vrot.lane.b32.xlu0 %v395, 32
    %v398 = vpop.permute.xlu0 %397
    %v400 = vadd.f32 %v390, %v398
    %v401 = vtanh.pop %v400
    %403 = vrot.lane.b32.xlu0 %v401, 64
    %v404 = vpop.permute.xlu0 %403
    %v406 = vmul.f32 %v387, %v404
    %408 = vrot.lane.b32.xlu0 %v406, 32
    %v409 = vpop.permute.xlu0 %408
    %s411 = scalar_lea.vmem [#allocation3], 8
    %412 = vst.msk [vmem:[%s411] sm:$0xff] %vm198, %v409
    %s413 = scalar_lea.vmem [#allocation2], 16
    %v414 = vld [vmem:[%s413] sm:$0xff]
    %v415 = vsel %vm198, %v409, 0
    %417 = vmatprep.subr.mxu0 0.0
    %418 = vmatpush1.msra.mxu0 0.0
    %419 = vmatprep.subr.mxu0 0.0
    %420 = vmatpush1.msra.mxu0 0.0
    %421 = vmatprep.subr.mxu0 0.0
    %422 = vmatpush1.msra.mxu0 0.0
    %423 = vmatprep.subr.mxu0 0.0
    %424 = vmatpush1.msra.mxu0 0.0
    %425 = vmatprep.subr.mxu0 0.0
    %426 = vmatpush1.msra.mxu0 0.0
    %427 = vmatprep.subr.mxu0 0.0
    %428 = vmatpush1.msra.mxu0 0.0
    %429 = vmatprep.subr.mxu0 0.0
    %430 = vmatpush1.msra.mxu0 0.0
    %431 = vmatprep.subr.mxu0 0.0
    %432 = vmatpush1.msra.mxu0 0.0
    %433 = vmatprep.subr.mxu0 0.0
    %434 = vmatpush1.msra.mxu0 0.0
    %435 = vmatprep.subr.mxu0 0.0
    %436 = vmatpush1.msra.mxu0 0.0
    %437 = vmatprep.subr.mxu0 0.0
    %438 = vmatpush1.msra.mxu0 0.0
    %439 = vmatprep.subr.mxu0 0.0
    %440 = vmatpush1.msra.mxu0 0.0
    %441 = vmatprep.subr.mxu0 0.0
    %442 = vmatpush1.msra.mxu0 %v51
    %443 = vmatprep.subr.mxu0 0.0
    %444 = vmatpush1.msra.mxu0 %v50
    %445 = vmatprep.subr.mxu0 0.0
    %446 = vmatpush1.msra.mxu0 %v49
    %447 = vmatprep.subr.mxu0 0.0
    %448 = vmatpush1.msra.mxu0 %v48
    %449 = vmatprep.subr.mxu0 0.0
    %450 = vmatpush2.msra.mxu0 0.0
    %451 = vmatprep.subr.mxu0 0.0
    %452 = vmatpush2.msra.mxu0 0.0
    %453 = vmatprep.subr.mxu0 0.0
    %454 = vmatpush2.msra.mxu0 0.0
    %455 = vmatprep.subr.mxu0 0.0
    %456 = vmatpush2.msra.mxu0 0.0
    %457 = vmatprep.subr.mxu0 0.0
    %458 = vmatpush2.msra.mxu0 0.0
    %459 = vmatprep.subr.mxu0 0.0
    %460 = vmatpush2.msra.mxu0 0.0
    %461 = vmatprep.subr.mxu0 0.0
    %462 = vmatpush2.msra.mxu0 0.0
    %463 = vmatprep.subr.mxu0 0.0
    %464 = vmatpush2.msra.mxu0 0.0
    %465 = vmatprep.subr.mxu0 0.0
    %466 = vmatpush2.msra.mxu0 0.0
    %467 = vmatprep.subr.mxu0 0.0
    %468 = vmatpush2.msra.mxu0 0.0
    %469 = vmatprep.subr.mxu0 0.0
    %470 = vmatpush2.msra.mxu0 0.0
    %471 = vmatprep.subr.mxu0 0.0
    %472 = vmatpush2.msra.mxu0 0.0
    %473 = vmatprep.subr.mxu0 0.0
    %474 = vmatpush2.msra.mxu0 0.0
    %475 = vmatprep.subr.mxu0 0.0
    %476 = vmatpush2.msra.mxu0 0.0
    %477 = vmatprep.subr.mxu0 0.0
    %478 = vmatpush2.msra.mxu0 0.0
    %479 = vmatprep.subr.mxu0 0.0
    %480 = vmatpush2.msra.mxu0 0.0
    %481 = vmatprep.mubr.f32.mxu0 0.0
    %482 = vmatmul.mubr.f32.gmra.mxu0 %v415
    %v483 = vpop.f32.mrf.mxu0
    %v484 = vadd.f32 0.0, %v483
    %v485 = vpop.f32.mrf.mxu0
    %486 = vdwg.mxu0
    %v487 = vadd.f32 %v414, %v484
    %v488 = vxor.u32 %v487, 2147483648
    %v489 = vmul.f32 %v488, 1.442695
    %v490 = vpow.pop %v489
    %v491 = vadd.f32 %v490, 1.0
    %v492 = vrcp.pop %v491
    %v493 = vmul.f32 1.0, %v492
    %v494 = vmul.f32 %v493, 2.0
    %v495 = vsub.f32 %v494, 1.0
    %v496 = vmul.f32 %v493, %v400
    %498 = vrot.lane.b32.xlu0 %v495, 64
    %v499 = vpop.permute.xlu0 %498
    %v501 = vmul.f32 %v493, %v499
    %503 = vrot.lane.b32.xlu0 %v501, 32
    %v504 = vpop.permute.xlu0 %503
    %v506 = vadd.f32 %v496, %v504
    %v507 = vtanh.pop %v506
    %509 = vrot.lane.b32.xlu0 %v507, 64
    %v510 = vpop.permute.xlu0 %509
    %v512 = vmul.f32 %v493, %v510
    %514 = vrot.lane.b32.xlu0 %v512, 32
    %v515 = vpop.permute.xlu0 %514
    %s517 = scalar_lea.vmem [#allocation3], 16
    %518 = vst.msk [vmem:[%s517] sm:$0xff] %vm198, %v515
    %s519 = scalar_lea.vmem [#allocation2], 24
    %v520 = vld [vmem:[%s519] sm:$0xff]
    %v521 = vsel %vm198, %v515, 0
    %523 = vmatprep.subr.mxu0 0.0
    %524 = vmatpush1.msra.mxu0 0.0
    %525 = vmatprep.subr.mxu0 0.0
    %526 = vmatpush1.msra.mxu0 0.0
    %527 = vmatprep.subr.mxu0 0.0
    %528 = vmatpush1.msra.mxu0 0.0
    %529 = vmatprep.subr.mxu0 0.0
    %530 = vmatpush1.msra.mxu0 0.0
    %531 = vmatprep.subr.mxu0 0.0
    %532 = vmatpush1.msra.mxu0 0.0
    %533 = vmatprep.subr.mxu0 0.0
    %534 = vmatpush1.msra.mxu0 0.0
    %535 = vmatprep.subr.mxu0 0.0
    %536 = vmatpush1.msra.mxu0 0.0
    %537 = vmatprep.subr.mxu0 0.0
    %538 = vmatpush1.msra.mxu0 0.0
    %539 = vmatprep.subr.mxu0 0.0
    %540 = vmatpush1.msra.mxu0 0.0
    %541 = vmatprep.subr.mxu0 0.0
    %542 = vmatpush1.msra.mxu0 0.0
    %543 = vmatprep.subr.mxu0 0.0
    %544 = vmatpush1.msra.mxu0 0.0
    %545 = vmatprep.subr.mxu0 0.0
    %546 = vmatpush1.msra.mxu0 0.0
    %547 = vmatprep.subr.mxu0 0.0
    %548 = vmatpush1.msra.mxu0 %v51
    %549 = vmatprep.subr.mxu0 0.0
    %550 = vmatpush1.msra.mxu0 %v50
    %551 = vmatprep.subr.mxu0 0.0
    %552 = vmatpush1.msra.mxu0 %v49
    %553 = vmatprep.subr.mxu0 0.0
    %554 = vmatpush1.msra.mxu0 %v48
    %555 = vmatprep.subr.mxu0 0.0
    %556 = vmatpush2.msra.mxu0 0.0
    %557 = vmatprep.subr.mxu0 0.0
    %558 = vmatpush2.msra.mxu0 0.0
    %559 = vmatprep.subr.mxu0 0.0
    %560 = vmatpush2.msra.mxu0 0.0
    %561 = vmatprep.subr.mxu0 0.0
    %562 = vmatpush2.msra.mxu0 0.0
    %563 = vmatprep.subr.mxu0 0.0
    %564 = vmatpush2.msra.mxu0 0.0
    %565 = vmatprep.subr.mxu0 0.0
    %566 = vmatpush2.msra.mxu0 0.0
    %567 = vmatprep.subr.mxu0 0.0
    %568 = vmatpush2.msra.mxu0 0.0
    %569 = vmatprep.subr.mxu0 0.0
    %570 = vmatpush2.msra.mxu0 0.0
    %571 = vmatprep.subr.mxu0 0.0
    %572 = vmatpush2.msra.mxu0 0.0
    %573 = vmatprep.subr.mxu0 0.0
    %574 = vmatpush2.msra.mxu0 0.0
    %575 = vmatprep.subr.mxu0 0.0
    %576 = vmatpush2.msra.mxu0 0.0
    %577 = vmatprep.subr.mxu0 0.0
    %578 = vmatpush2.msra.mxu0 0.0
    %579 = vmatprep.subr.mxu0 0.0
    %580 = vmatpush2.msra.mxu0 0.0
    %581 = vmatprep.subr.mxu0 0.0
    %582 = vmatpush2.msra.mxu0 0.0
    %583 = vmatprep.subr.mxu0 0.0
    %584 = vmatpush2.msra.mxu0 0.0
    %585 = vmatprep.subr.mxu0 0.0
    %586 = vmatpush2.msra.mxu0 0.0
    %587 = vmatprep.mubr.f32.mxu0 0.0
    %588 = vmatmul.mubr.f32.gmra.mxu0 %v521
    %v589 = vpop.f32.mrf.mxu0
    %v590 = vadd.f32 0.0, %v589
    %v591 = vpop.f32.mrf.mxu0
    %592 = vdwg.mxu0
    %v593 = vadd.f32 %v520, %v590
    %v594 = vxor.u32 %v593, 2147483648
    %v595 = vmul.f32 %v594, 1.442695
    %v596 = vpow.pop %v595
    %v597 = vadd.f32 %v596, 1.0
    %v598 = vrcp.pop %v597
    %v599 = vmul.f32 1.0, %v598
    %v600 = vmul.f32 %v599, 2.0
    %v601 = vsub.f32 %v600, 1.0
    %v602 = vmul.f32 %v599, %v506
    %604 = vrot.lane.b32.xlu0 %v601, 64
    %v605 = vpop.permute.xlu0 %604
    %v607 = vmul.f32 %v599, %v605
    %609 = vrot.lane.b32.xlu0 %v607, 32
    %v610 = vpop.permute.xlu0 %609
    %v612 = vadd.f32 %v602, %v610
    %v613 = vtanh.pop %v612
    %615 = vrot.lane.b32.xlu0 %v613, 64
    %v616 = vpop.permute.xlu0 %615
    %v618 = vmul.f32 %v599, %v616
    %620 = vrot.lane.b32.xlu0 %v618, 32
    %v621 = vpop.permute.xlu0 %620
    %s623 = scalar_lea.vmem [#allocation3], 24
    %624 = vst.msk [vmem:[%s623] sm:$0xff] %vm198, %v621
    %s625 = scalar_lea.vmem [#allocation2], 32
    %v626 = vld [vmem:[%s625] sm:$0xff]
    %v627 = vsel %vm198, %v621, 0
    %629 = vmatprep.subr.mxu0 0.0
    %630 = vmatpush1.msra.mxu0 0.0
    %631 = vmatprep.subr.mxu0 0.0
    %632 = vmatpush1.msra.mxu0 0.0
    %633 = vmatprep.subr.mxu0 0.0
    %634 = vmatpush1.msra.mxu0 0.0
    %635 = vmatprep.subr.mxu0 0.0
    %636 = vmatpush1.msra.mxu0 0.0
    %637 = vmatprep.subr.mxu0 0.0
    %638 = vmatpush1.msra.mxu0 0.0
    %639 = vmatprep.subr.mxu0 0.0
    %640 = vmatpush1.msra.mxu0 0.0
    %641 = vmatprep.subr.mxu0 0.0
    %642 = vmatpush1.msra.mxu0 0.0
    %643 = vmatprep.subr.mxu0 0.0
    %644 = vmatpush1.msra.mxu0 0.0
    %645 = vmatprep.subr.mxu0 0.0
    %646 = vmatpush1.msra.mxu0 0.0
    %647 = vmatprep.subr.mxu0 0.0
    %648 = vmatpush1.msra.mxu0 0.0
    %649 = vmatprep.subr.mxu0 0.0
    %650 = vmatpush1.msra.mxu0 0.0
    %651 = vmatprep.subr.mxu0 0.0
    %652 = vmatpush1.msra.mxu0 0.0
    %653 = vmatprep.subr.mxu0 0.0
    %654 = vmatpush1.msra.mxu0 %v51
    %655 = vmatprep.subr.mxu0 0.0
    %656 = vmatpush1.msra.mxu0 %v50
    %657 = vmatprep.subr.mxu0 0.0
    %658 = vmatpush1.msra.mxu0 %v49
    %659 = vmatprep.subr.mxu0 0.0
    %660 = vmatpush1.msra.mxu0 %v48
    %661 = vmatprep.subr.mxu0 0.0
    %662 = vmatpush2.msra.mxu0 0.0
    %663 = vmatprep.subr.mxu0 0.0
    %664 = vmatpush2.msra.mxu0 0.0
    %665 = vmatprep.subr.mxu0 0.0
    %666 = vmatpush2.msra.mxu0 0.0
    %667 = vmatprep.subr.mxu0 0.0
    %668 = vmatpush2.msra.mxu0 0.0
    %669 = vmatprep.subr.mxu0 0.0
    %670 = vmatpush2.msra.mxu0 0.0
    %671 = vmatprep.subr.mxu0 0.0
    %672 = vmatpush2.msra.mxu0 0.0
    %673 = vmatprep.subr.mxu0 0.0
    %674 = vmatpush2.msra.mxu0 0.0
    %675 = vmatprep.subr.mxu0 0.0
    %676 = vmatpush2.msra.mxu0 0.0
    %677 = vmatprep.subr.mxu0 0.0
    %678 = vmatpush2.msra.mxu0 0.0
    %679 = vmatprep.subr.mxu0 0.0
    %680 = vmatpush2.msra.mxu0 0.0
    %681 = vmatprep.subr.mxu0 0.0
    %682 = vmatpush2.msra.mxu0 0.0
    %683 = vmatprep.subr.mxu0 0.0
    %684 = vmatpush2.msra.mxu0 0.0
    %685 = vmatprep.subr.mxu0 0.0
    %686 = vmatpush2.msra.mxu0 0.0
    %687 = vmatprep.subr.mxu0 0.0
    %688 = vmatpush2.msra.mxu0 0.0
    %689 = vmatprep.subr.mxu0 0.0
    %690 = vmatpush2.msra.mxu0 0.0
    %691 = vmatprep.subr.mxu0 0.0
    %692 = vmatpush2.msra.mxu0 0.0
    %693 = vmatprep.mubr.f32.mxu0 0.0
    %694 = vmatmul.mubr.f32.gmra.mxu0 %v627
    %v695 = vpop.f32.mrf.mxu0
    %v696 = vadd.f32 0.0, %v695
    %v697 = vpop.f32.mrf.mxu0
    %698 = vdwg.mxu0
    %v699 = vadd.f32 %v626, %v696
    %v700 = vxor.u32 %v699, 2147483648
    %v701 = vmul.f32 %v700, 1.442695
    %v702 = vpow.pop %v701
    %v703 = vadd.f32 %v702, 1.0
    %v704 = vrcp.pop %v703
    %v705 = vmul.f32 1.0, %v704
    %v706 = vmul.f32 %v705, 2.0
    %v707 = vsub.f32 %v706, 1.0
    %v708 = vmul.f32 %v705, %v612
    %710 = vrot.lane.b32.xlu0 %v707, 64
    %v711 = vpop.permute.xlu0 %710
    %v713 = vmul.f32 %v705, %v711
    %715 = vrot.lane.b32.xlu0 %v713, 32
    %v716 = vpop.permute.xlu0 %715
    %v718 = vadd.f32 %v708, %v716
    %v719 = vtanh.pop %v718
    %721 = vrot.lane.b32.xlu0 %v719, 64
    %v722 = vpop.permute.xlu0 %721
    %v724 = vmul.f32 %v705, %v722
    %726 = vrot.lane.b32.xlu0 %v724, 32
    %v727 = vpop.permute.xlu0 %726
    %s729 = scalar_lea.vmem [#allocation3], 32
    %730 = vst.msk [vmem:[%s729] sm:$0xff] %vm198, %v727
    %s731 = scalar_lea.vmem [#allocation2], 40
    %v732 = vld [vmem:[%s731] sm:$0xff]
    %v733 = vsel %vm198, %v727, 0
    %735 = vmatprep.subr.mxu0 0.0
    %736 = vmatpush1.msra.mxu0 0.0
    %737 = vmatprep.subr.mxu0 0.0
    %738 = vmatpush1.msra.mxu0 0.0
    %739 = vmatprep.subr.mxu0 0.0
    %740 = vmatpush1.msra.mxu0 0.0
    %741 = vmatprep.subr.mxu0 0.0
    %742 = vmatpush1.msra.mxu0 0.0
    %743 = vmatprep.subr.mxu0 0.0
    %744 = vmatpush1.msra.mxu0 0.0
    %745 = vmatprep.subr.mxu0 0.0
    %746 = vmatpush1.msra.mxu0 0.0
    %747 = vmatprep.subr.mxu0 0.0
    %748 = vmatpush1.msra.mxu0 0.0
    %749 = vmatprep.subr.mxu0 0.0
    %750 = vmatpush1.msra.mxu0 0.0
    %751 = vmatprep.subr.mxu0 0.0
    %752 = vmatpush1.msra.mxu0 0.0
    %753 = vmatprep.subr.mxu0 0.0
    %754 = vmatpush1.msra.mxu0 0.0
    %755 = vmatprep.subr.mxu0 0.0
    %756 = vmatpush1.msra.mxu0 0.0
    %757 = vmatprep.subr.mxu0 0.0
    %758 = vmatpush1.msra.mxu0 0.0
    %759 = vmatprep.subr.mxu0 0.0
    %760 = vmatpush1.msra.mxu0 %v51
    %761 = vmatprep.subr.mxu0 0.0
    %762 = vmatpush1.msra.mxu0 %v50
    %763 = vmatprep.subr.mxu0 0.0
    %764 = vmatpush1.msra.mxu0 %v49
    %765 = vmatprep.subr.mxu0 0.0
    %766 = vmatpush1.msra.mxu0 %v48
    %767 = vmatprep.subr.mxu0 0.0
    %768 = vmatpush2.msra.mxu0 0.0
    %769 = vmatprep.subr.mxu0 0.0
    %770 = vmatpush2.msra.mxu0 0.0
    %771 = vmatprep.subr.mxu0 0.0
    %772 = vmatpush2.msra.mxu0 0.0
    %773 = vmatprep.subr.mxu0 0.0
    %774 = vmatpush2.msra.mxu0 0.0
    %775 = vmatprep.subr.mxu0 0.0
    %776 = vmatpush2.msra.mxu0 0.0
    %777 = vmatprep.subr.mxu0 0.0
    %778 = vmatpush2.msra.mxu0 0.0
    %779 = vmatprep.subr.mxu0 0.0
    %780 = vmatpush2.msra.mxu0 0.0
    %781 = vmatprep.subr.mxu0 0.0
    %782 = vmatpush2.msra.mxu0 0.0
    %783 = vmatprep.subr.mxu0 0.0
    %784 = vmatpush2.msra.mxu0 0.0
    %785 = vmatprep.subr.mxu0 0.0
    %786 = vmatpush2.msra.mxu0 0.0
    %787 = vmatprep.subr.mxu0 0.0
    %788 = vmatpush2.msra.mxu0 0.0
    %789 = vmatprep.subr.mxu0 0.0
    %790 = vmatpush2.msra.mxu0 0.0
    %791 = vmatprep.subr.mxu0 0.0
    %792 = vmatpush2.msra.mxu0 0.0
    %793 = vmatprep.subr.mxu0 0.0
    %794 = vmatpush2.msra.mxu0 0.0
    %795 = vmatprep.subr.mxu0 0.0
    %796 = vmatpush2.msra.mxu0 0.0
    %797 = vmatprep.subr.mxu0 0.0
    %798 = vmatpush2.msra.mxu0 0.0
    %799 = vmatprep.mubr.f32.mxu0 0.0
    %800 = vmatmul.mubr.f32.gmra.mxu0 %v733
    %v801 = vpop.f32.mrf.mxu0
    %v802 = vadd.f32 0.0, %v801
    %v803 = vpop.f32.mrf.mxu0
    %804 = vdwg.mxu0
    %v805 = vadd.f32 %v732, %v802
    %v806 = vxor.u32 %v805, 2147483648
    %v807 = vmul.f32 %v806, 1.442695
    %v808 = vpow.pop %v807
    %v809 = vadd.f32 %v808, 1.0
    %v810 = vrcp.pop %v809
    %v811 = vmul.f32 1.0, %v810
    %v812 = vmul.f32 %v811, 2.0
    %v813 = vsub.f32 %v812, 1.0
    %v814 = vmul.f32 %v811, %v718
    %816 = vrot.lane.b32.xlu0 %v813, 64
    %v817 = vpop.permute.xlu0 %816
    %v819 = vmul.f32 %v811, %v817
    %821 = vrot.lane.b32.xlu0 %v819, 32
    %v822 = vpop.permute.xlu0 %821
    %v824 = vadd.f32 %v814, %v822
    %v825 = vtanh.pop %v824
    %827 = vrot.lane.b32.xlu0 %v825, 64
    %v828 = vpop.permute.xlu0 %827
    %v830 = vmul.f32 %v811, %v828
    %832 = vrot.lane.b32.xlu0 %v830, 32
    %v833 = vpop.permute.xlu0 %832
    %s835 = scalar_lea.vmem [#allocation3], 40
    %836 = vst.msk [vmem:[%s835] sm:$0xff] %vm198, %v833
    %s837 = scalar_lea.vmem [#allocation2], 48
    %v838 = vld [vmem:[%s837] sm:$0xff]
    %v839 = vsel %vm198, %v833, 0
    %841 = vmatprep.subr.mxu0 0.0
    %842 = vmatpush1.msra.mxu0 0.0
    %843 = vmatprep.subr.mxu0 0.0
    %844 = vmatpush1.msra.mxu0 0.0
    %845 = vmatprep.subr.mxu0 0.0
    %846 = vmatpush1.msra.mxu0 0.0
    %847 = vmatprep.subr.mxu0 0.0
    %848 = vmatpush1.msra.mxu0 0.0
    %849 = vmatprep.subr.mxu0 0.0
    %850 = vmatpush1.msra.mxu0 0.0
    %851 = vmatprep.subr.mxu0 0.0
    %852 = vmatpush1.msra.mxu0 0.0
    %853 = vmatprep.subr.mxu0 0.0
    %854 = vmatpush1.msra.mxu0 0.0
    %855 = vmatprep.subr.mxu0 0.0
    %856 = vmatpush1.msra.mxu0 0.0
    %857 = vmatprep.subr.mxu0 0.0
    %858 = vmatpush1.msra.mxu0 0.0
    %859 = vmatprep.subr.mxu0 0.0
    %860 = vmatpush1.msra.mxu0 0.0
    %861 = vmatprep.subr.mxu0 0.0
    %862 = vmatpush1.msra.mxu0 0.0
    %863 = vmatprep.subr.mxu0 0.0
    %864 = vmatpush1.msra.mxu0 0.0
    %865 = vmatprep.subr.mxu0 0.0
    %866 = vmatpush1.msra.mxu0 %v51
    %867 = vmatprep.subr.mxu0 0.0
    %868 = vmatpush1.msra.mxu0 %v50
    %869 = vmatprep.subr.mxu0 0.0
    %870 = vmatpush1.msra.mxu0 %v49
    %871 = vmatprep.subr.mxu0 0.0
    %872 = vmatpush1.msra.mxu0 %v48
    %873 = vmatprep.subr.mxu0 0.0
    %874 = vmatpush2.msra.mxu0 0.0
    %875 = vmatprep.subr.mxu0 0.0
    %876 = vmatpush2.msra.mxu0 0.0
    %877 = vmatprep.subr.mxu0 0.0
    %878 = vmatpush2.msra.mxu0 0.0
    %879 = vmatprep.subr.mxu0 0.0
    %880 = vmatpush2.msra.mxu0 0.0
    %881 = vmatprep.subr.mxu0 0.0
    %882 = vmatpush2.msra.mxu0 0.0
    %883 = vmatprep.subr.mxu0 0.0
    %884 = vmatpush2.msra.mxu0 0.0
    %885 = vmatprep.subr.mxu0 0.0
    %886 = vmatpush2.msra.mxu0 0.0
    %887 = vmatprep.subr.mxu0 0.0
    %888 = vmatpush2.msra.mxu0 0.0
    %889 = vmatprep.subr.mxu0 0.0
    %890 = vmatpush2.msra.mxu0 0.0
    %891 = vmatprep.subr.mxu0 0.0
    %892 = vmatpush2.msra.mxu0 0.0
    %893 = vmatprep.subr.mxu0 0.0
    %894 = vmatpush2.msra.mxu0 0.0
    %895 = vmatprep.subr.mxu0 0.0
    %896 = vmatpush2.msra.mxu0 0.0
    %897 = vmatprep.subr.mxu0 0.0
    %898 = vmatpush2.msra.mxu0 0.0
    %899 = vmatprep.subr.mxu0 0.0
    %900 = vmatpush2.msra.mxu0 0.0
    %901 = vmatprep.subr.mxu0 0.0
    %902 = vmatpush2.msra.mxu0 0.0
    %903 = vmatprep.subr.mxu0 0.0
    %904 = vmatpush2.msra.mxu0 0.0
    %905 = vmatprep.mubr.f32.mxu0 0.0
    %906 = vmatmul.mubr.f32.gmra.mxu0 %v839
    %v907 = vpop.f32.mrf.mxu0
    %v908 = vadd.f32 0.0, %v907
    %v909 = vpop.f32.mrf.mxu0
    %910 = vdwg.mxu0
    %v911 = vadd.f32 %v838, %v908
    %v912 = vxor.u32 %v911, 2147483648
    %v913 = vmul.f32 %v912, 1.442695
    %v914 = vpow.pop %v913
    %v915 = vadd.f32 %v914, 1.0
    %v916 = vrcp.pop %v915
    %v917 = vmul.f32 1.0, %v916
    %v918 = vmul.f32 %v917, 2.0
    %v919 = vsub.f32 %v918, 1.0
    %v920 = vmul.f32 %v917, %v824
    %922 = vrot.lane.b32.xlu0 %v919, 64
    %v923 = vpop.permute.xlu0 %922
    %v925 = vmul.f32 %v917, %v923
    %927 = vrot.lane.b32.xlu0 %v925, 32
    %v928 = vpop.permute.xlu0 %927
    %v930 = vadd.f32 %v920, %v928
    %v931 = vtanh.pop %v930
    %933 = vrot.lane.b32.xlu0 %v931, 64
    %v934 = vpop.permute.xlu0 %933
    %v936 = vmul.f32 %v917, %v934
    %938 = vrot.lane.b32.xlu0 %v936, 32
    %v939 = vpop.permute.xlu0 %938
    %s941 = scalar_lea.vmem [#allocation3], 48
    %942 = vst.msk [vmem:[%s941] sm:$0xff] %vm198, %v939
    %s943 = scalar_lea.vmem [#allocation2], 56
    %v944 = vld [vmem:[%s943] sm:$0xff]
    %v945 = vsel %vm198, %v939, 0
    %947 = vmatprep.subr.mxu0 0.0
    %948 = vmatpush1.msra.mxu0 0.0
    %949 = vmatprep.subr.mxu0 0.0
    %950 = vmatpush1.msra.mxu0 0.0
    %951 = vmatprep.subr.mxu0 0.0
    %952 = vmatpush1.msra.mxu0 0.0
    %953 = vmatprep.subr.mxu0 0.0
    %954 = vmatpush1.msra.mxu0 0.0
    %955 = vmatprep.subr.mxu0 0.0
    %956 = vmatpush1.msra.mxu0 0.0
    %957 = vmatprep.subr.mxu0 0.0
    %958 = vmatpush1.msra.mxu0 0.0
    %959 = vmatprep.subr.mxu0 0.0
    %960 = vmatpush1.msra.mxu0 0.0
    %961 = vmatprep.subr.mxu0 0.0
    %962 = vmatpush1.msra.mxu0 0.0
    %963 = vmatprep.subr.mxu0 0.0
    %964 = vmatpush1.msra.mxu0 0.0
    %965 = vmatprep.subr.mxu0 0.0
    %966 = vmatpush1.msra.mxu0 0.0
    %967 = vmatprep.subr.mxu0 0.0
    %968 = vmatpush1.msra.mxu0 0.0
    %969 = vmatprep.subr.mxu0 0.0
    %970 = vmatpush1.msra.mxu0 0.0
    %971 = vmatprep.subr.mxu0 0.0
    %972 = vmatpush1.msra.mxu0 %v51
    %973 = vmatprep.subr.mxu0 0.0
    %974 = vmatpush1.msra.mxu0 %v50
    %975 = vmatprep.subr.mxu0 0.0
    %976 = vmatpush1.msra.mxu0 %v49
    %977 = vmatprep.subr.mxu0 0.0
    %978 = vmatpush1.msra.mxu0 %v48
    %979 = vmatprep.subr.mxu0 0.0
    %980 = vmatpush2.msra.mxu0 0.0
    %981 = vmatprep.subr.mxu0 0.0
    %982 = vmatpush2.msra.mxu0 0.0
    %983 = vmatprep.subr.mxu0 0.0
    %984 = vmatpush2.msra.mxu0 0.0
    %985 = vmatprep.subr.mxu0 0.0
    %986 = vmatpush2.msra.mxu0 0.0
    %987 = vmatprep.subr.mxu0 0.0
    %988 = vmatpush2.msra.mxu0 0.0
    %989 = vmatprep.subr.mxu0 0.0
    %990 = vmatpush2.msra.mxu0 0.0
    %991 = vmatprep.subr.mxu0 0.0
    %992 = vmatpush2.msra.mxu0 0.0
    %993 = vmatprep.subr.mxu0 0.0
    %994 = vmatpush2.msra.mxu0 0.0
    %995 = vmatprep.subr.mxu0 0.0
    %996 = vmatpush2.msra.mxu0 0.0
    %997 = vmatprep.subr.mxu0 0.0
    %998 = vmatpush2.msra.mxu0 0.0
    %999 = vmatprep.subr.mxu0 0.0
    %1000 = vmatpush2.msra.mxu0 0.0
    %1001 = vmatprep.subr.mxu0 0.0
    %1002 = vmatpush2.msra.mxu0 0.0
    %1003 = vmatprep.subr.mxu0 0.0
    %1004 = vmatpush2.msra.mxu0 0.0
    %1005 = vmatprep.subr.mxu0 0.0
    %1006 = vmatpush2.msra.mxu0 0.0
    %1007 = vmatprep.subr.mxu0 0.0
    %1008 = vmatpush2.msra.mxu0 0.0
    %1009 = vmatprep.subr.mxu0 0.0
    %1010 = vmatpush2.msra.mxu0 0.0
    %1011 = vmatprep.mubr.f32.mxu0 0.0
    %1012 = vmatmul.mubr.f32.gmra.mxu0 %v945
    %v1013 = vpop.f32.mrf.mxu0
    %v1014 = vadd.f32 0.0, %v1013
    %v1015 = vpop.f32.mrf.mxu0
    %1016 = vdwg.mxu0
    %v1017 = vadd.f32 %v944, %v1014
    %v1018 = vxor.u32 %v1017, 2147483648
    %v1019 = vmul.f32 %v1018, 1.442695
    %v1020 = vpow.pop %v1019
    %v1021 = vadd.f32 %v1020, 1.0
    %v1022 = vrcp.pop %v1021
    %v1023 = vmul.f32 1.0, %v1022
    %v1024 = vmul.f32 %v1023, 2.0
    %v1025 = vsub.f32 %v1024, 1.0
    %v1026 = vmul.f32 %v1023, %v930
    %1028 = vrot.lane.b32.xlu0 %v1025, 64
    %v1029 = vpop.permute.xlu0 %1028
    %v1031 = vmul.f32 %v1023, %v1029
    %1033 = vrot.lane.b32.xlu0 %v1031, 32
    %v1034 = vpop.permute.xlu0 %1033
    %v1036 = vadd.f32 %v1026, %v1034
    %v1037 = vtanh.pop %v1036
    %1039 = vrot.lane.b32.xlu0 %v1037, 64
    %v1040 = vpop.permute.xlu0 %1039
    %v1042 = vmul.f32 %v1023, %v1040
    %1044 = vrot.lane.b32.xlu0 %v1042, 32
    %v1045 = vpop.permute.xlu0 %1044
    %s1047 = scalar_lea.vmem [#allocation3], 56
    %1048 = vst.msk [vmem:[%s1047] sm:$0xff] %vm198, %v1045
    %1049 = vst.msk [vmem:[#allocation7] sm:$0xff] %vm198, %v1045
    %1051 = vrot.lane.b32.xlu0 %v1036, 96
    %v1052 = vpop.permute.xlu0 %1051
    %1054 = vst.msk [vmem:[#allocation8] sm:$0xff] %vm198, %v1052
    %v1055 = vld [vmem:[#allocation3] sm:$0xff]
    %v1056 = vld [vmem:[#allocation3 + $0x8] sm:$0xff]
    %v1057 = vld [vmem:[#allocation3 + $0x10] sm:$0xff]
    %v1058 = vld [vmem:[#allocation3 + $0x18] sm:$0xff]
    %v1059 = vld [vmem:[#allocation3 + $0x20] sm:$0xff]
    %v1060 = vld [vmem:[#allocation3 + $0x28] sm:$0xff]
    %v1061 = vld [vmem:[#allocation3 + $0x30] sm:$0xff]
    %v1062 = vld [vmem:[#allocation3 + $0x38] sm:$0xff]
    %v1063 = vld [vmem:[%s1 + $0x28] sm:$0xff]
    %v1064 = vld [vmem:[%s1 + $0x30] sm:$0xff]
    %v1065 = vld [vmem:[%s1 + $0x38] sm:$0xff]
    %v1066 = vld [vmem:[%s1 + $0x40] sm:$0xff]
    %v1067 = vld [vmem:[%s1 + $0x48] sm:$0xff]
    %v1068 = vld [vmem:[%s1 + $0x50] sm:$0xff]
    %v1069 = vld [vmem:[%s1 + $0x58] sm:$0xff]
    %v1070 = vld [vmem:[%s1 + $0x60] sm:$0xff]
    %v1071 = vld [vmem:[%s2 + $0x1] sm:$0x1]
    %v1072 = vlaneseq
    %v1073 = vshrl.u32 %v1072, 7
    %v1074 = vsub.s32 0, %v1073
    %v1075 = vrot.slane %v1071, %v1074
    %v1077 = vsel %vm198, %v1055, 0
    %v1080 = vsel %vm198, %v1056, 0
    %v1083 = vsel %vm198, %v1057, 0
    %v1086 = vsel %vm198, %v1058, 0
    %v1089 = vsel %vm198, %v1059, 0
    %v1092 = vsel %vm198, %v1060, 0
    %v1095 = vsel %vm198, %v1061, 0
    %v1098 = vsel %vm198, %v1062, 0
    %1100 = vmatprep.subr.mxu0 0.0
    %1101 = vmatpush1.msra.mxu0 0.0
    %1102 = vmatprep.subr.mxu0 0.0
    %1103 = vmatpush1.msra.mxu0 0.0
    %1104 = vmatprep.subr.mxu0 0.0
    %1105 = vmatpush1.msra.mxu0 0.0
    %1106 = vmatprep.subr.mxu0 0.0
    %1107 = vmatpush1.msra.mxu0 0.0
    %1108 = vmatprep.subr.mxu0 0.0
    %1109 = vmatpush1.msra.mxu0 0.0
    %1110 = vmatprep.subr.mxu0 0.0
    %1111 = vmatpush1.msra.mxu0 0.0
    %1112 = vmatprep.subr.mxu0 0.0
    %1113 = vmatpush1.msra.mxu0 0.0
    %1114 = vmatprep.subr.mxu0 0.0
    %1115 = vmatpush1.msra.mxu0 0.0
    %1116 = vmatprep.subr.mxu0 0.0
    %1117 = vmatpush1.msra.mxu0 0.0
    %1118 = vmatprep.subr.mxu0 0.0
    %1119 = vmatpush1.msra.mxu0 0.0
    %1120 = vmatprep.subr.mxu0 0.0
    %1121 = vmatpush1.msra.mxu0 0.0
    %1122 = vmatprep.subr.mxu0 0.0
    %1123 = vmatpush1.msra.mxu0 0.0
    %1124 = vmatprep.subr.mxu0 0.0
    %1125 = vmatpush1.msra.mxu0 %v1066
    %1126 = vmatprep.subr.mxu0 0.0
    %1127 = vmatpush1.msra.mxu0 %v1065
    %1128 = vmatprep.subr.mxu0 0.0
    %1129 = vmatpush1.msra.mxu0 %v1064
    %1130 = vmatprep.subr.mxu0 0.0
    %1131 = vmatpush1.msra.mxu0 %v1063
    %1132 = vmatprep.subr.mxu0 0.0
    %1133 = vmatpush2.msra.mxu0 0.0
    %1134 = vmatprep.subr.mxu0 0.0
    %1135 = vmatpush2.msra.mxu0 0.0
    %1136 = vmatprep.subr.mxu0 0.0
    %1137 = vmatpush2.msra.mxu0 0.0
    %1138 = vmatprep.subr.mxu0 0.0
    %1139 = vmatpush2.msra.mxu0 0.0
    %1140 = vmatprep.subr.mxu0 0.0
    %1141 = vmatpush2.msra.mxu0 0.0
    %1142 = vmatprep.subr.mxu0 0.0
    %1143 = vmatpush2.msra.mxu0 0.0
    %1144 = vmatprep.subr.mxu0 0.0
    %1145 = vmatpush2.msra.mxu0 0.0
    %1146 = vmatprep.subr.mxu0 0.0
    %1147 = vmatpush2.msra.mxu0 0.0
    %1148 = vmatprep.subr.mxu0 0.0
    %1149 = vmatpush2.msra.mxu0 0.0
    %1150 = vmatprep.subr.mxu0 0.0
    %1151 = vmatpush2.msra.mxu0 0.0
    %1152 = vmatprep.subr.mxu0 0.0
    %1153 = vmatpush2.msra.mxu0 0.0
    %1154 = vmatprep.subr.mxu0 0.0
    %1155 = vmatpush2.msra.mxu0 0.0
    %1156 = vmatprep.subr.mxu0 0.0
    %1157 = vmatpush2.msra.mxu0 0.0
    %1158 = vmatprep.subr.mxu0 0.0
    %1159 = vmatpush2.msra.mxu0 0.0
    %1160 = vmatprep.subr.mxu0 0.0
    %1161 = vmatpush2.msra.mxu0 0.0
    %1162 = vmatprep.subr.mxu0 0.0
    %1163 = vmatpush2.msra.mxu0 0.0
    %1164 = vmatprep.mubr.f32.mxu0 0.0
    %1165 = vmatmul.mubr.f32.gmra.mxu0 %v1077
    %v1166 = vpop.f32.mrf.mxu0
    %v1167 = vadd.f32 %v1075, %v1166
    %v1168 = vpop.f32.mrf.mxu0
    %1169 = vmatprep.mubr.f32.mxu0 0.0
    %1170 = vmatmul.mubr.f32.gmra.mxu0 %v1080
    %v1171 = vpop.f32.mrf.mxu0
    %v1172 = vadd.f32 %v1075, %v1171
    %v1173 = vpop.f32.mrf.mxu0
    %1174 = vmatprep.mubr.f32.mxu0 0.0
    %1175 = vmatmul.mubr.f32.gmra.mxu0 %v1083
    %v1176 = vpop.f32.mrf.mxu0
    %v1177 = vadd.f32 %v1075, %v1176
    %v1178 = vpop.f32.mrf.mxu0
    %1179 = vmatprep.mubr.f32.mxu0 0.0
    %1180 = vmatmul.mubr.f32.gmra.mxu0 %v1086
    %v1181 = vpop.f32.mrf.mxu0
    %v1182 = vadd.f32 %v1075, %v1181
    %v1183 = vpop.f32.mrf.mxu0
    %1184 = vmatprep.mubr.f32.mxu0 0.0
    %1185 = vmatmul.mubr.f32.gmra.mxu0 %v1089
    %v1186 = vpop.f32.mrf.mxu0
    %v1187 = vadd.f32 %v1075, %v1186
    %v1188 = vpop.f32.mrf.mxu0
    %1189 = vmatprep.mubr.f32.mxu0 0.0
    %1190 = vmatmul.mubr.f32.gmra.mxu0 %v1092
    %v1191 = vpop.f32.mrf.mxu0
    %v1192 = vadd.f32 %v1075, %v1191
    %v1193 = vpop.f32.mrf.mxu0
    %1194 = vmatprep.mubr.f32.mxu0 0.0
    %1195 = vmatmul.mubr.f32.gmra.mxu0 %v1095
    %v1196 = vpop.f32.mrf.mxu0
    %v1197 = vadd.f32 %v1075, %v1196
    %v1198 = vpop.f32.mrf.mxu0
    %1199 = vmatprep.mubr.f32.mxu0 0.0
    %1200 = vmatmul.mubr.f32.gmra.mxu0 %v1098
    %v1201 = vpop.f32.mrf.mxu0
    %v1202 = vadd.f32 %v1075, %v1201
    %v1203 = vpop.f32.mrf.mxu0
    %1204 = vdwg.mxu0
    %1205 = vst [vmem:[#allocation2] sm:$0xff] %v1167
    %1206 = vst [vmem:[#allocation2 + $0x8] sm:$0xff] %v1172
    %1207 = vst [vmem:[#allocation2 + $0x10] sm:$0xff] %v1177
    %1208 = vst [vmem:[#allocation2 + $0x18] sm:$0xff] %v1182
    %1209 = vst [vmem:[#allocation2 + $0x20] sm:$0xff] %v1187
    %1210 = vst [vmem:[#allocation2 + $0x28] sm:$0xff] %v1192
    %1211 = vst [vmem:[#allocation2 + $0x30] sm:$0xff] %v1197
    %1212 = vst [vmem:[#allocation2 + $0x38] sm:$0xff] %v1202
    %s1213 = scalar_lea.vmem %s3, 8
    %v1214 = vld [vmem:[%s1213] sm:$0xff]
    %s1215 = scalar_lea.vmem [#allocation4], 8
    %v1216 = vld [vmem:[%s1215] sm:$0xff]
    %v1217 = vld [vmem:[#allocation2] sm:$0xff]
    %v1219 = vsel %vm198, %v1214, 0
    %1221 = vmatprep.subr.mxu0 0.0
    %1222 = vmatpush1.msra.mxu0 0.0
    %1223 = vmatprep.subr.mxu0 0.0
    %1224 = vmatpush1.msra.mxu0 0.0
    %1225 = vmatprep.subr.mxu0 0.0
    %1226 = vmatpush1.msra.mxu0 0.0
    %1227 = vmatprep.subr.mxu0 0.0
    %1228 = vmatpush1.msra.mxu0 0.0
    %1229 = vmatprep.subr.mxu0 0.0
    %1230 = vmatpush1.msra.mxu0 0.0
    %1231 = vmatprep.subr.mxu0 0.0
    %1232 = vmatpush1.msra.mxu0 0.0
    %1233 = vmatprep.subr.mxu0 0.0
    %1234 = vmatpush1.msra.mxu0 0.0
    %1235 = vmatprep.subr.mxu0 0.0
    %1236 = vmatpush1.msra.mxu0 0.0
    %1237 = vmatprep.subr.mxu0 0.0
    %1238 = vmatpush1.msra.mxu0 0.0
    %1239 = vmatprep.subr.mxu0 0.0
    %1240 = vmatpush1.msra.mxu0 0.0
    %1241 = vmatprep.subr.mxu0 0.0
    %1242 = vmatpush1.msra.mxu0 0.0
    %1243 = vmatprep.subr.mxu0 0.0
    %1244 = vmatpush1.msra.mxu0 0.0
    %1245 = vmatprep.subr.mxu0 0.0
    %1246 = vmatpush1.msra.mxu0 %v1070
    %1247 = vmatprep.subr.mxu0 0.0
    %1248 = vmatpush1.msra.mxu0 %v1069
    %1249 = vmatprep.subr.mxu0 0.0
    %1250 = vmatpush1.msra.mxu0 %v1068
    %1251 = vmatprep.subr.mxu0 0.0
    %1252 = vmatpush1.msra.mxu0 %v1067
    %1253 = vmatprep.subr.mxu0 0.0
    %1254 = vmatpush2.msra.mxu0 0.0
    %1255 = vmatprep.subr.mxu0 0.0
    %1256 = vmatpush2.msra.mxu0 0.0
    %1257 = vmatprep.subr.mxu0 0.0
    %1258 = vmatpush2.msra.mxu0 0.0
    %1259 = vmatprep.subr.mxu0 0.0
    %1260 = vmatpush2.msra.mxu0 0.0
    %1261 = vmatprep.subr.mxu0 0.0
    %1262 = vmatpush2.msra.mxu0 0.0
    %1263 = vmatprep.subr.mxu0 0.0
    %1264 = vmatpush2.msra.mxu0 0.0
    %1265 = vmatprep.subr.mxu0 0.0
    %1266 = vmatpush2.msra.mxu0 0.0
    %1267 = vmatprep.subr.mxu0 0.0
    %1268 = vmatpush2.msra.mxu0 0.0
    %1269 = vmatprep.subr.mxu0 0.0
    %1270 = vmatpush2.msra.mxu0 0.0
    %1271 = vmatprep.subr.mxu0 0.0
    %1272 = vmatpush2.msra.mxu0 0.0
    %1273 = vmatprep.subr.mxu0 0.0
    %1274 = vmatpush2.msra.mxu0 0.0
    %1275 = vmatprep.subr.mxu0 0.0
    %1276 = vmatpush2.msra.mxu0 0.0
    %1277 = vmatprep.subr.mxu0 0.0
    %1278 = vmatpush2.msra.mxu0 0.0
    %1279 = vmatprep.subr.mxu0 0.0
    %1280 = vmatpush2.msra.mxu0 0.0
    %1281 = vmatprep.subr.mxu0 0.0
    %1282 = vmatpush2.msra.mxu0 0.0
    %1283 = vmatprep.subr.mxu0 0.0
    %1284 = vmatpush2.msra.mxu0 0.0
    %1285 = vmatprep.mubr.f32.mxu0 0.0
    %1286 = vmatmul.mubr.f32.gmra.mxu0 %v1219
    %v1287 = vpop.f32.mrf.mxu0
    %v1288 = vadd.f32 0.0, %v1287
    %v1289 = vpop.f32.mrf.mxu0
    %1290 = vdwg.mxu0
    %v1291 = vadd.f32 %v1217, %v1288
    %v1292 = vxor.u32 %v1291, 2147483648
    %v1293 = vmul.f32 %v1292, 1.442695
    %v1294 = vpow.pop %v1293
    %v1295 = vadd.f32 %v1294, 1.0
    %v1296 = vrcp.pop %v1295
    %v1297 = vmul.f32 1.0, %v1296
    %v1298 = vmul.f32 %v1297, 2.0
    %v1299 = vsub.f32 %v1298, 1.0
    %1301 = vrot.lane.b32.xlu0 %v1216, 32
    %v1302 = vpop.permute.xlu0 %1301
    %v1304 = vmul.f32 %v1297, %v1302
    %1306 = vrot.lane.b32.xlu0 %v1299, 64
    %v1307 = vpop.permute.xlu0 %1306
    %v1309 = vmul.f32 %v1297, %v1307
    %1311 = vrot.lane.b32.xlu0 %v1309, 32
    %v1312 = vpop.permute.xlu0 %1311
    %v1314 = vadd.f32 %v1304, %v1312
    %v1315 = vtanh.pop %v1314
    %1317 = vrot.lane.b32.xlu0 %v1315, 64
    %v1318 = vpop.permute.xlu0 %1317
    %v1320 = vmul.f32 %v1297, %v1318
    %v1321 = vld [vmem:[%s307] sm:$0xff]
    %1323 = vrot.lane.b32.xlu0 %v1320, 32
    %v1324 = vpop.permute.xlu0 %1323
    %v1325 = vsel %vm198, %v1324, 0
    %1327 = vmatprep.subr.mxu0 0.0
    %1328 = vmatpush1.msra.mxu0 0.0
    %1329 = vmatprep.subr.mxu0 0.0
    %1330 = vmatpush1.msra.mxu0 0.0
    %1331 = vmatprep.subr.mxu0 0.0
    %1332 = vmatpush1.msra.mxu0 0.0
    %1333 = vmatprep.subr.mxu0 0.0
    %1334 = vmatpush1.msra.mxu0 0.0
    %1335 = vmatprep.subr.mxu0 0.0
    %1336 = vmatpush1.msra.mxu0 0.0
    %1337 = vmatprep.subr.mxu0 0.0
    %1338 = vmatpush1.msra.mxu0 0.0
    %1339 = vmatprep.subr.mxu0 0.0
    %1340 = vmatpush1.msra.mxu0 0.0
    %1341 = vmatprep.subr.mxu0 0.0
    %1342 = vmatpush1.msra.mxu0 0.0
    %1343 = vmatprep.subr.mxu0 0.0
    %1344 = vmatpush1.msra.mxu0 0.0
    %1345 = vmatprep.subr.mxu0 0.0
    %1346 = vmatpush1.msra.mxu0 0.0
    %1347 = vmatprep.subr.mxu0 0.0
    %1348 = vmatpush1.msra.mxu0 0.0
    %1349 = vmatprep.subr.mxu0 0.0
    %1350 = vmatpush1.msra.mxu0 0.0
    %1351 = vmatprep.subr.mxu0 0.0
    %1352 = vmatpush1.msra.mxu0 %v1070
    %1353 = vmatprep.subr.mxu0 0.0
    %1354 = vmatpush1.msra.mxu0 %v1069
    %1355 = vmatprep.subr.mxu0 0.0
    %1356 = vmatpush1.msra.mxu0 %v1068
    %1357 = vmatprep.subr.mxu0 0.0
    %1358 = vmatpush1.msra.mxu0 %v1067
    %1359 = vmatprep.subr.mxu0 0.0
    %1360 = vmatpush2.msra.mxu0 0.0
    %1361 = vmatprep.subr.mxu0 0.0
    %1362 = vmatpush2.msra.mxu0 0.0
    %1363 = vmatprep.subr.mxu0 0.0
    %1364 = vmatpush2.msra.mxu0 0.0
    %1365 = vmatprep.subr.mxu0 0.0
    %1366 = vmatpush2.msra.mxu0 0.0
    %1367 = vmatprep.subr.mxu0 0.0
    %1368 = vmatpush2.msra.mxu0 0.0
    %1369 = vmatprep.subr.mxu0 0.0
    %1370 = vmatpush2.msra.mxu0 0.0
    %1371 = vmatprep.subr.mxu0 0.0
    %1372 = vmatpush2.msra.mxu0 0.0
    %1373 = vmatprep.subr.mxu0 0.0
    %1374 = vmatpush2.msra.mxu0 0.0
    %1375 = vmatprep.subr.mxu0 0.0
    %1376 = vmatpush2.msra.mxu0 0.0
    %1377 = vmatprep.subr.mxu0 0.0
    %1378 = vmatpush2.msra.mxu0 0.0
    %1379 = vmatprep.subr.mxu0 0.0
    %1380 = vmatpush2.msra.mxu0 0.0
    %1381 = vmatprep.subr.mxu0 0.0
    %1382 = vmatpush2.msra.mxu0 0.0
    %1383 = vmatprep.subr.mxu0 0.0
    %1384 = vmatpush2.msra.mxu0 0.0
    %1385 = vmatprep.subr.mxu0 0.0
    %1386 = vmatpush2.msra.mxu0 0.0
    %1387 = vmatprep.subr.mxu0 0.0
    %1388 = vmatpush2.msra.mxu0 0.0
    %1389 = vmatprep.subr.mxu0 0.0
    %1390 = vmatpush2.msra.mxu0 0.0
    %1391 = vmatprep.mubr.f32.mxu0 0.0
    %1392 = vmatmul.mubr.f32.gmra.mxu0 %v1325
    %v1393 = vpop.f32.mrf.mxu0
    %v1394 = vadd.f32 0.0, %v1393
    %v1395 = vpop.f32.mrf.mxu0
    %1396 = vdwg.mxu0
    %v1397 = vadd.f32 %v1321, %v1394
    %v1398 = vxor.u32 %v1397, 2147483648
    %v1399 = vmul.f32 %v1398, 1.442695
    %v1400 = vpow.pop %v1399
    %v1401 = vadd.f32 %v1400, 1.0
    %v1402 = vrcp.pop %v1401
    %v1403 = vmul.f32 1.0, %v1402
    %v1404 = vmul.f32 %v1403, 2.0
    %v1405 = vsub.f32 %v1404, 1.0
    %v1406 = vmul.f32 %v1403, %v1314
    %1408 = vrot.lane.b32.xlu0 %v1405, 64
    %v1409 = vpop.permute.xlu0 %1408
    %v1411 = vmul.f32 %v1403, %v1409
    %1413 = vrot.lane.b32.xlu0 %v1411, 32
    %v1414 = vpop.permute.xlu0 %1413
    %v1416 = vadd.f32 %v1406, %v1414
    %v1417 = vtanh.pop %v1416
    %1419 = vrot.lane.b32.xlu0 %v1417, 64
    %v1420 = vpop.permute.xlu0 %1419
    %v1422 = vmul.f32 %v1403, %v1420
    %v1423 = vld [vmem:[%s413] sm:$0xff]
    %1425 = vrot.lane.b32.xlu0 %v1422, 32
    %v1426 = vpop.permute.xlu0 %1425
    %v1427 = vsel %vm198, %v1426, 0
    %1429 = vmatprep.subr.mxu0 0.0
    %1430 = vmatpush1.msra.mxu0 0.0
    %1431 = vmatprep.subr.mxu0 0.0
    %1432 = vmatpush1.msra.mxu0 0.0
    %1433 = vmatprep.subr.mxu0 0.0
    %1434 = vmatpush1.msra.mxu0 0.0
    %1435 = vmatprep.subr.mxu0 0.0
    %1436 = vmatpush1.msra.mxu0 0.0
    %1437 = vmatprep.subr.mxu0 0.0
    %1438 = vmatpush1.msra.mxu0 0.0
    %1439 = vmatprep.subr.mxu0 0.0
    %1440 = vmatpush1.msra.mxu0 0.0
    %1441 = vmatprep.subr.mxu0 0.0
    %1442 = vmatpush1.msra.mxu0 0.0
    %1443 = vmatprep.subr.mxu0 0.0
    %1444 = vmatpush1.msra.mxu0 0.0
    %1445 = vmatprep.subr.mxu0 0.0
    %1446 = vmatpush1.msra.mxu0 0.0
    %1447 = vmatprep.subr.mxu0 0.0
    %1448 = vmatpush1.msra.mxu0 0.0
    %1449 = vmatprep.subr.mxu0 0.0
    %1450 = vmatpush1.msra.mxu0 0.0
    %1451 = vmatprep.subr.mxu0 0.0
    %1452 = vmatpush1.msra.mxu0 0.0
    %1453 = vmatprep.subr.mxu0 0.0
    %1454 = vmatpush1.msra.mxu0 %v1070
    %1455 = vmatprep.subr.mxu0 0.0
    %1456 = vmatpush1.msra.mxu0 %v1069
    %1457 = vmatprep.subr.mxu0 0.0
    %1458 = vmatpush1.msra.mxu0 %v1068
    %1459 = vmatprep.subr.mxu0 0.0
    %1460 = vmatpush1.msra.mxu0 %v1067
    %1461 = vmatprep.subr.mxu0 0.0
    %1462 = vmatpush2.msra.mxu0 0.0
    %1463 = vmatprep.subr.mxu0 0.0
    %1464 = vmatpush2.msra.mxu0 0.0
    %1465 = vmatprep.subr.mxu0 0.0
    %1466 = vmatpush2.msra.mxu0 0.0
    %1467 = vmatprep.subr.mxu0 0.0
    %1468 = vmatpush2.msra.mxu0 0.0
    %1469 = vmatprep.subr.mxu0 0.0
    %1470 = vmatpush2.msra.mxu0 0.0
    %1471 = vmatprep.subr.mxu0 0.0
    %1472 = vmatpush2.msra.mxu0 0.0
    %1473 = vmatprep.subr.mxu0 0.0
    %1474 = vmatpush2.msra.mxu0 0.0
    %1475 = vmatprep.subr.mxu0 0.0
    %1476 = vmatpush2.msra.mxu0 0.0
    %1477 = vmatprep.subr.mxu0 0.0
    %1478 = vmatpush2.msra.mxu0 0.0
    %1479 = vmatprep.subr.mxu0 0.0
    %1480 = vmatpush2.msra.mxu0 0.0
    %1481 = vmatprep.subr.mxu0 0.0
    %1482 = vmatpush2.msra.mxu0 0.0
    %1483 = vmatprep.subr.mxu0 0.0
    %1484 = vmatpush2.msra.mxu0 0.0
    %1485 = vmatprep.subr.mxu0 0.0
    %1486 = vmatpush2.msra.mxu0 0.0
    %1487 = vmatprep.subr.mxu0 0.0
    %1488 = vmatpush2.msra.mxu0 0.0
    %1489 = vmatprep.subr.mxu0 0.0
    %1490 = vmatpush2.msra.mxu0 0.0
    %1491 = vmatprep.subr.mxu0 0.0
    %1492 = vmatpush2.msra.mxu0 0.0
    %1493 = vmatprep.mubr.f32.mxu0 0.0
    %1494 = vmatmul.mubr.f32.gmra.mxu0 %v1427
    %v1495 = vpop.f32.mrf.mxu0
    %v1496 = vadd.f32 0.0, %v1495
    %v1497 = vpop.f32.mrf.mxu0
    %1498 = vdwg.mxu0
    %v1499 = vadd.f32 %v1423, %v1496
    %v1500 = vxor.u32 %v1499, 2147483648
    %v1501 = vmul.f32 %v1500, 1.442695
    %v1502 = vpow.pop %v1501
    %v1503 = vadd.f32 %v1502, 1.0
    %v1504 = vrcp.pop %v1503
    %v1505 = vmul.f32 1.0, %v1504
    %v1506 = vmul.f32 %v1505, 2.0
    %v1507 = vsub.f32 %v1506, 1.0
    %v1508 = vmul.f32 %v1505, %v1416
    %1510 = vrot.lane.b32.xlu0 %v1507, 64
    %v1511 = vpop.permute.xlu0 %1510
    %v1513 = vmul.f32 %v1505, %v1511
    %1515 = vrot.lane.b32.xlu0 %v1513, 32
    %v1516 = vpop.permute.xlu0 %1515
    %v1518 = vadd.f32 %v1508, %v1516
    %v1519 = vtanh.pop %v1518
    %1521 = vrot.lane.b32.xlu0 %v1519, 64
    %v1522 = vpop.permute.xlu0 %1521
    %v1524 = vmul.f32 %v1505, %v1522
    %v1525 = vld [vmem:[%s519] sm:$0xff]
    %1527 = vrot.lane.b32.xlu0 %v1524, 32
    %v1528 = vpop.permute.xlu0 %1527
    %v1529 = vsel %vm198, %v1528, 0
    %1531 = vmatprep.subr.mxu0 0.0
    %1532 = vmatpush1.msra.mxu0 0.0
    %1533 = vmatprep.subr.mxu0 0.0
    %1534 = vmatpush1.msra.mxu0 0.0
    %1535 = vmatprep.subr.mxu0 0.0
    %1536 = vmatpush1.msra.mxu0 0.0
    %1537 = vmatprep.subr.mxu0 0.0
    %1538 = vmatpush1.msra.mxu0 0.0
    %1539 = vmatprep.subr.mxu0 0.0
    %1540 = vmatpush1.msra.mxu0 0.0
    %1541 = vmatprep.subr.mxu0 0.0
    %1542 = vmatpush1.msra.mxu0 0.0
    %1543 = vmatprep.subr.mxu0 0.0
    %1544 = vmatpush1.msra.mxu0 0.0
    %1545 = vmatprep.subr.mxu0 0.0
    %1546 = vmatpush1.msra.mxu0 0.0
    %1547 = vmatprep.subr.mxu0 0.0
    %1548 = vmatpush1.msra.mxu0 0.0
    %1549 = vmatprep.subr.mxu0 0.0
    %1550 = vmatpush1.msra.mxu0 0.0
    %1551 = vmatprep.subr.mxu0 0.0
    %1552 = vmatpush1.msra.mxu0 0.0
    %1553 = vmatprep.subr.mxu0 0.0
    %1554 = vmatpush1.msra.mxu0 0.0
    %1555 = vmatprep.subr.mxu0 0.0
    %1556 = vmatpush1.msra.mxu0 %v1070
    %1557 = vmatprep.subr.mxu0 0.0
    %1558 = vmatpush1.msra.mxu0 %v1069
    %1559 = vmatprep.subr.mxu0 0.0
    %1560 = vmatpush1.msra.mxu0 %v1068
    %1561 = vmatprep.subr.mxu0 0.0
    %1562 = vmatpush1.msra.mxu0 %v1067
    %1563 = vmatprep.subr.mxu0 0.0
    %1564 = vmatpush2.msra.mxu0 0.0
    %1565 = vmatprep.subr.mxu0 0.0
    %1566 = vmatpush2.msra.mxu0 0.0
    %1567 = vmatprep.subr.mxu0 0.0
    %1568 = vmatpush2.msra.mxu0 0.0
    %1569 = vmatprep.subr.mxu0 0.0
    %1570 = vmatpush2.msra.mxu0 0.0
    %1571 = vmatprep.subr.mxu0 0.0
    %1572 = vmatpush2.msra.mxu0 0.0
    %1573 = vmatprep.subr.mxu0 0.0
    %1574 = vmatpush2.msra.mxu0 0.0
    %1575 = vmatprep.subr.mxu0 0.0
    %1576 = vmatpush2.msra.mxu0 0.0
    %1577 = vmatprep.subr.mxu0 0.0
    %1578 = vmatpush2.msra.mxu0 0.0
    %1579 = vmatprep.subr.mxu0 0.0
    %1580 = vmatpush2.msra.mxu0 0.0
    %1581 = vmatprep.subr.mxu0 0.0
    %1582 = vmatpush2.msra.mxu0 0.0
    %1583 = vmatprep.subr.mxu0 0.0
    %1584 = vmatpush2.msra.mxu0 0.0
    %1585 = vmatprep.subr.mxu0 0.0
    %1586 = vmatpush2.msra.mxu0 0.0
    %1587 = vmatprep.subr.mxu0 0.0
    %1588 = vmatpush2.msra.mxu0 0.0
    %1589 = vmatprep.subr.mxu0 0.0
    %1590 = vmatpush2.msra.mxu0 0.0
    %1591 = vmatprep.subr.mxu0 0.0
    %1592 = vmatpush2.msra.mxu0 0.0
    %1593 = vmatprep.subr.mxu0 0.0
    %1594 = vmatpush2.msra.mxu0 0.0
    %1595 = vmatprep.mubr.f32.mxu0 0.0
    %1596 = vmatmul.mubr.f32.gmra.mxu0 %v1529
    %v1597 = vpop.f32.mrf.mxu0
    %v1598 = vadd.f32 0.0, %v1597
    %v1599 = vpop.f32.mrf.mxu0
    %1600 = vdwg.mxu0
    %v1601 = vadd.f32 %v1525, %v1598
    %v1602 = vxor.u32 %v1601, 2147483648
    %v1603 = vmul.f32 %v1602, 1.442695
    %v1604 = vpow.pop %v1603
    %v1605 = vadd.f32 %v1604, 1.0
    %v1606 = vrcp.pop %v1605
    %v1607 = vmul.f32 1.0, %v1606
    %v1608 = vmul.f32 %v1607, 2.0
    %v1609 = vsub.f32 %v1608, 1.0
    %v1610 = vmul.f32 %v1607, %v1518
    %1612 = vrot.lane.b32.xlu0 %v1609, 64
    %v1613 = vpop.permute.xlu0 %1612
    %v1615 = vmul.f32 %v1607, %v1613
    %1617 = vrot.lane.b32.xlu0 %v1615, 32
    %v1618 = vpop.permute.xlu0 %1617
    %v1620 = vadd.f32 %v1610, %v1618
    %v1621 = vtanh.pop %v1620
    %1623 = vrot.lane.b32.xlu0 %v1621, 64
    %v1624 = vpop.permute.xlu0 %1623
    %v1626 = vmul.f32 %v1607, %v1624
    %v1627 = vld [vmem:[%s625] sm:$0xff]
    %1629 = vrot.lane.b32.xlu0 %v1626, 32
    %v1630 = vpop.permute.xlu0 %1629
    %v1631 = vsel %vm198, %v1630, 0
    %1633 = vmatprep.subr.mxu0 0.0
    %1634 = vmatpush1.msra.mxu0 0.0
    %1635 = vmatprep.subr.mxu0 0.0
    %1636 = vmatpush1.msra.mxu0 0.0
    %1637 = vmatprep.subr.mxu0 0.0
    %1638 = vmatpush1.msra.mxu0 0.0
    %1639 = vmatprep.subr.mxu0 0.0
    %1640 = vmatpush1.msra.mxu0 0.0
    %1641 = vmatprep.subr.mxu0 0.0
    %1642 = vmatpush1.msra.mxu0 0.0
    %1643 = vmatprep.subr.mxu0 0.0
    %1644 = vmatpush1.msra.mxu0 0.0
    %1645 = vmatprep.subr.mxu0 0.0
    %1646 = vmatpush1.msra.mxu0 0.0
    %1647 = vmatprep.subr.mxu0 0.0
    %1648 = vmatpush1.msra.mxu0 0.0
    %1649 = vmatprep.subr.mxu0 0.0
    %1650 = vmatpush1.msra.mxu0 0.0
    %1651 = vmatprep.subr.mxu0 0.0
    %1652 = vmatpush1.msra.mxu0 0.0
    %1653 = vmatprep.subr.mxu0 0.0
    %1654 = vmatpush1.msra.mxu0 0.0
    %1655 = vmatprep.subr.mxu0 0.0
    %1656 = vmatpush1.msra.mxu0 0.0
    %1657 = vmatprep.subr.mxu0 0.0
    %1658 = vmatpush1.msra.mxu0 %v1070
    %1659 = vmatprep.subr.mxu0 0.0
    %1660 = vmatpush1.msra.mxu0 %v1069
    %1661 = vmatprep.subr.mxu0 0.0
    %1662 = vmatpush1.msra.mxu0 %v1068
    %1663 = vmatprep.subr.mxu0 0.0
    %1664 = vmatpush1.msra.mxu0 %v1067
    %1665 = vmatprep.subr.mxu0 0.0
    %1666 = vmatpush2.msra.mxu0 0.0
    %1667 = vmatprep.subr.mxu0 0.0
    %1668 = vmatpush2.msra.mxu0 0.0
    %1669 = vmatprep.subr.mxu0 0.0
    %1670 = vmatpush2.msra.mxu0 0.0
    %1671 = vmatprep.subr.mxu0 0.0
    %1672 = vmatpush2.msra.mxu0 0.0
    %1673 = vmatprep.subr.mxu0 0.0
    %1674 = vmatpush2.msra.mxu0 0.0
    %1675 = vmatprep.subr.mxu0 0.0
    %1676 = vmatpush2.msra.mxu0 0.0
    %1677 = vmatprep.subr.mxu0 0.0
    %1678 = vmatpush2.msra.mxu0 0.0
    %1679 = vmatprep.subr.mxu0 0.0
    %1680 = vmatpush2.msra.mxu0 0.0
    %1681 = vmatprep.subr.mxu0 0.0
    %1682 = vmatpush2.msra.mxu0 0.0
    %1683 = vmatprep.subr.mxu0 0.0
    %1684 = vmatpush2.msra.mxu0 0.0
    %1685 = vmatprep.subr.mxu0 0.0
    %1686 = vmatpush2.msra.mxu0 0.0
    %1687 = vmatprep.subr.mxu0 0.0
    %1688 = vmatpush2.msra.mxu0 0.0
    %1689 = vmatprep.subr.mxu0 0.0
    %1690 = vmatpush2.msra.mxu0 0.0
    %1691 = vmatprep.subr.mxu0 0.0
    %1692 = vmatpush2.msra.mxu0 0.0
    %1693 = vmatprep.subr.mxu0 0.0
    %1694 = vmatpush2.msra.mxu0 0.0
    %1695 = vmatprep.subr.mxu0 0.0
    %1696 = vmatpush2.msra.mxu0 0.0
    %1697 = vmatprep.mubr.f32.mxu0 0.0
    %1698 = vmatmul.mubr.f32.gmra.mxu0 %v1631
    %v1699 = vpop.f32.mrf.mxu0
    %v1700 = vadd.f32 0.0, %v1699
    %v1701 = vpop.f32.mrf.mxu0
    %1702 = vdwg.mxu0
    %v1703 = vadd.f32 %v1627, %v1700
    %v1704 = vxor.u32 %v1703, 2147483648
    %v1705 = vmul.f32 %v1704, 1.442695
    %v1706 = vpow.pop %v1705
    %v1707 = vadd.f32 %v1706, 1.0
    %v1708 = vrcp.pop %v1707
    %v1709 = vmul.f32 1.0, %v1708
    %v1710 = vmul.f32 %v1709, 2.0
    %v1711 = vsub.f32 %v1710, 1.0
    %v1712 = vmul.f32 %v1709, %v1620
    %1714 = vrot.lane.b32.xlu0 %v1711, 64
    %v1715 = vpop.permute.xlu0 %1714
    %v1717 = vmul.f32 %v1709, %v1715
    %1719 = vrot.lane.b32.xlu0 %v1717, 32
    %v1720 = vpop.permute.xlu0 %1719
    %v1722 = vadd.f32 %v1712, %v1720
    %v1723 = vtanh.pop %v1722
    %1725 = vrot.lane.b32.xlu0 %v1723, 64
    %v1726 = vpop.permute.xlu0 %1725
    %v1728 = vmul.f32 %v1709, %v1726
    %v1729 = vld [vmem:[%s731] sm:$0xff]
    %1731 = vrot.lane.b32.xlu0 %v1728, 32
    %v1732 = vpop.permute.xlu0 %1731
    %v1733 = vsel %vm198, %v1732, 0
    %1735 = vmatprep.subr.mxu0 0.0
    %1736 = vmatpush1.msra.mxu0 0.0
    %1737 = vmatprep.subr.mxu0 0.0
    %1738 = vmatpush1.msra.mxu0 0.0
    %1739 = vmatprep.subr.mxu0 0.0
    %1740 = vmatpush1.msra.mxu0 0.0
    %1741 = vmatprep.subr.mxu0 0.0
    %1742 = vmatpush1.msra.mxu0 0.0
    %1743 = vmatprep.subr.mxu0 0.0
    %1744 = vmatpush1.msra.mxu0 0.0
    %1745 = vmatprep.subr.mxu0 0.0
    %1746 = vmatpush1.msra.mxu0 0.0
    %1747 = vmatprep.subr.mxu0 0.0
    %1748 = vmatpush1.msra.mxu0 0.0
    %1749 = vmatprep.subr.mxu0 0.0
    %1750 = vmatpush1.msra.mxu0 0.0
    %1751 = vmatprep.subr.mxu0 0.0
    %1752 = vmatpush1.msra.mxu0 0.0
    %1753 = vmatprep.subr.mxu0 0.0
    %1754 = vmatpush1.msra.mxu0 0.0
    %1755 = vmatprep.subr.mxu0 0.0
    %1756 = vmatpush1.msra.mxu0 0.0
    %1757 = vmatprep.subr.mxu0 0.0
    %1758 = vmatpush1.msra.mxu0 0.0
    %1759 = vmatprep.subr.mxu0 0.0
    %1760 = vmatpush1.msra.mxu0 %v1070
    %1761 = vmatprep.subr.mxu0 0.0
    %1762 = vmatpush1.msra.mxu0 %v1069
    %1763 = vmatprep.subr.mxu0 0.0
    %1764 = vmatpush1.msra.mxu0 %v1068
    %1765 = vmatprep.subr.mxu0 0.0
    %1766 = vmatpush1.msra.mxu0 %v1067
    %1767 = vmatprep.subr.mxu0 0.0
    %1768 = vmatpush2.msra.mxu0 0.0
    %1769 = vmatprep.subr.mxu0 0.0
    %1770 = vmatpush2.msra.mxu0 0.0
    %1771 = vmatprep.subr.mxu0 0.0
    %1772 = vmatpush2.msra.mxu0 0.0
    %1773 = vmatprep.subr.mxu0 0.0
    %1774 = vmatpush2.msra.mxu0 0.0
    %1775 = vmatprep.subr.mxu0 0.0
    %1776 = vmatpush2.msra.mxu0 0.0
    %1777 = vmatprep.subr.mxu0 0.0
    %1778 = vmatpush2.msra.mxu0 0.0
    %1779 = vmatprep.subr.mxu0 0.0
    %1780 = vmatpush2.msra.mxu0 0.0
    %1781 = vmatprep.subr.mxu0 0.0
    %1782 = vmatpush2.msra.mxu0 0.0
    %1783 = vmatprep.subr.mxu0 0.0
    %1784 = vmatpush2.msra.mxu0 0.0
    %1785 = vmatprep.subr.mxu0 0.0
    %1786 = vmatpush2.msra.mxu0 0.0
    %1787 = vmatprep.subr.mxu0 0.0
    %1788 = vmatpush2.msra.mxu0 0.0
    %1789 = vmatprep.subr.mxu0 0.0
    %1790 = vmatpush2.msra.mxu0 0.0
    %1791 = vmatprep.subr.mxu0 0.0
    %1792 = vmatpush2.msra.mxu0 0.0
    %1793 = vmatprep.subr.mxu0 0.0
    %1794 = vmatpush2.msra.mxu0 0.0
    %1795 = vmatprep.subr.mxu0 0.0
    %1796 = vmatpush2.msra.mxu0 0.0
    %1797 = vmatprep.subr.mxu0 0.0
    %1798 = vmatpush2.msra.mxu0 0.0
    %1799 = vmatprep.mubr.f32.mxu0 0.0
    %1800 = vmatmul.mubr.f32.gmra.mxu0 %v1733
    %v1801 = vpop.f32.mrf.mxu0
    %v1802 = vadd.f32 0.0, %v1801
    %v1803 = vpop.f32.mrf.mxu0
    %1804 = vdwg.mxu0
    %v1805 = vadd.f32 %v1729, %v1802
    %v1806 = vxor.u32 %v1805, 2147483648
    %v1807 = vmul.f32 %v1806, 1.442695
    %v1808 = vpow.pop %v1807
    %v1809 = vadd.f32 %v1808, 1.0
    %v1810 = vrcp.pop %v1809
    %v1811 = vmul.f32 1.0, %v1810
    %v1812 = vmul.f32 %v1811, 2.0
    %v1813 = vsub.f32 %v1812, 1.0
    %v1814 = vmul.f32 %v1811, %v1722
    %1816 = vrot.lane.b32.xlu0 %v1813, 64
    %v1817 = vpop.permute.xlu0 %1816
    %v1819 = vmul.f32 %v1811, %v1817
    %1821 = vrot.lane.b32.xlu0 %v1819, 32
    %v1822 = vpop.permute.xlu0 %1821
    %v1824 = vadd.f32 %v1814, %v1822
    %v1825 = vtanh.pop %v1824
    %1827 = vrot.lane.b32.xlu0 %v1825, 64
    %v1828 = vpop.permute.xlu0 %1827
    %v1830 = vmul.f32 %v1811, %v1828
    %v1831 = vld [vmem:[%s837] sm:$0xff]
    %1833 = vrot.lane.b32.xlu0 %v1830, 32
    %v1834 = vpop.permute.xlu0 %1833
    %v1835 = vsel %vm198, %v1834, 0
    %1837 = vmatprep.subr.mxu0 0.0
    %1838 = vmatpush1.msra.mxu0 0.0
    %1839 = vmatprep.subr.mxu0 0.0
    %1840 = vmatpush1.msra.mxu0 0.0
    %1841 = vmatprep.subr.mxu0 0.0
    %1842 = vmatpush1.msra.mxu0 0.0
    %1843 = vmatprep.subr.mxu0 0.0
    %1844 = vmatpush1.msra.mxu0 0.0
    %1845 = vmatprep.subr.mxu0 0.0
    %1846 = vmatpush1.msra.mxu0 0.0
    %1847 = vmatprep.subr.mxu0 0.0
    %1848 = vmatpush1.msra.mxu0 0.0
    %1849 = vmatprep.subr.mxu0 0.0
    %1850 = vmatpush1.msra.mxu0 0.0
    %1851 = vmatprep.subr.mxu0 0.0
    %1852 = vmatpush1.msra.mxu0 0.0
    %1853 = vmatprep.subr.mxu0 0.0
    %1854 = vmatpush1.msra.mxu0 0.0
    %1855 = vmatprep.subr.mxu0 0.0
    %1856 = vmatpush1.msra.mxu0 0.0
    %1857 = vmatprep.subr.mxu0 0.0
    %1858 = vmatpush1.msra.mxu0 0.0
    %1859 = vmatprep.subr.mxu0 0.0
    %1860 = vmatpush1.msra.mxu0 0.0
    %1861 = vmatprep.subr.mxu0 0.0
    %1862 = vmatpush1.msra.mxu0 %v1070
    %1863 = vmatprep.subr.mxu0 0.0
    %1864 = vmatpush1.msra.mxu0 %v1069
    %1865 = vmatprep.subr.mxu0 0.0
    %1866 = vmatpush1.msra.mxu0 %v1068
    %1867 = vmatprep.subr.mxu0 0.0
    %1868 = vmatpush1.msra.mxu0 %v1067
    %1869 = vmatprep.subr.mxu0 0.0
    %1870 = vmatpush2.msra.mxu0 0.0
    %1871 = vmatprep.subr.mxu0 0.0
    %1872 = vmatpush2.msra.mxu0 0.0
    %1873 = vmatprep.subr.mxu0 0.0
    %1874 = vmatpush2.msra.mxu0 0.0
    %1875 = vmatprep.subr.mxu0 0.0
    %1876 = vmatpush2.msra.mxu0 0.0
    %1877 = vmatprep.subr.mxu0 0.0
    %1878 = vmatpush2.msra.mxu0 0.0
    %1879 = vmatprep.subr.mxu0 0.0
    %1880 = vmatpush2.msra.mxu0 0.0
    %1881 = vmatprep.subr.mxu0 0.0
    %1882 = vmatpush2.msra.mxu0 0.0
    %1883 = vmatprep.subr.mxu0 0.0
    %1884 = vmatpush2.msra.mxu0 0.0
    %1885 = vmatprep.subr.mxu0 0.0
    %1886 = vmatpush2.msra.mxu0 0.0
    %1887 = vmatprep.subr.mxu0 0.0
    %1888 = vmatpush2.msra.mxu0 0.0
    %1889 = vmatprep.subr.mxu0 0.0
    %1890 = vmatpush2.msra.mxu0 0.0
    %1891 = vmatprep.subr.mxu0 0.0
    %1892 = vmatpush2.msra.mxu0 0.0
    %1893 = vmatprep.subr.mxu0 0.0
    %1894 = vmatpush2.msra.mxu0 0.0
    %1895 = vmatprep.subr.mxu0 0.0
    %1896 = vmatpush2.msra.mxu0 0.0
    %1897 = vmatprep.subr.mxu0 0.0
    %1898 = vmatpush2.msra.mxu0 0.0
    %1899 = vmatprep.subr.mxu0 0.0
    %1900 = vmatpush2.msra.mxu0 0.0
    %1901 = vmatprep.mubr.f32.mxu0 0.0
    %1902 = vmatmul.mubr.f32.gmra.mxu0 %v1835
    %v1903 = vpop.f32.mrf.mxu0
    %v1904 = vadd.f32 0.0, %v1903
    %v1905 = vpop.f32.mrf.mxu0
    %1906 = vdwg.mxu0
    %v1907 = vadd.f32 %v1831, %v1904
    %v1908 = vxor.u32 %v1907, 2147483648
    %v1909 = vmul.f32 %v1908, 1.442695
    %v1910 = vpow.pop %v1909
    %v1911 = vadd.f32 %v1910, 1.0
    %v1912 = vrcp.pop %v1911
    %v1913 = vmul.f32 1.0, %v1912
    %v1914 = vmul.f32 %v1913, 2.0
    %v1915 = vsub.f32 %v1914, 1.0
    %v1916 = vmul.f32 %v1913, %v1824
    %1918 = vrot.lane.b32.xlu0 %v1915, 64
    %v1919 = vpop.permute.xlu0 %1918
    %v1921 = vmul.f32 %v1913, %v1919
    %1923 = vrot.lane.b32.xlu0 %v1921, 32
    %v1924 = vpop.permute.xlu0 %1923
    %v1926 = vadd.f32 %v1916, %v1924
    %v1927 = vtanh.pop %v1926
    %1929 = vrot.lane.b32.xlu0 %v1927, 64
    %v1930 = vpop.permute.xlu0 %1929
    %v1932 = vmul.f32 %v1913, %v1930
    %v1933 = vld [vmem:[%s943] sm:$0xff]
    %1935 = vrot.lane.b32.xlu0 %v1932, 32
    %v1936 = vpop.permute.xlu0 %1935
    %v1937 = vsel %vm198, %v1936, 0
    %1939 = vmatprep.subr.mxu0 0.0
    %1940 = vmatpush1.msra.mxu0 0.0
    %1941 = vmatprep.subr.mxu0 0.0
    %1942 = vmatpush1.msra.mxu0 0.0
    %1943 = vmatprep.subr.mxu0 0.0
    %1944 = vmatpush1.msra.mxu0 0.0
    %1945 = vmatprep.subr.mxu0 0.0
    %1946 = vmatpush1.msra.mxu0 0.0
    %1947 = vmatprep.subr.mxu0 0.0
    %1948 = vmatpush1.msra.mxu0 0.0
    %1949 = vmatprep.subr.mxu0 0.0
    %1950 = vmatpush1.msra.mxu0 0.0
    %1951 = vmatprep.subr.mxu0 0.0
    %1952 = vmatpush1.msra.mxu0 0.0
    %1953 = vmatprep.subr.mxu0 0.0
    %1954 = vmatpush1.msra.mxu0 0.0
    %1955 = vmatprep.subr.mxu0 0.0
    %1956 = vmatpush1.msra.mxu0 0.0
    %1957 = vmatprep.subr.mxu0 0.0
    %1958 = vmatpush1.msra.mxu0 0.0
    %1959 = vmatprep.subr.mxu0 0.0
    %1960 = vmatpush1.msra.mxu0 0.0
    %1961 = vmatprep.subr.mxu0 0.0
    %1962 = vmatpush1.msra.mxu0 0.0
    %1963 = vmatprep.subr.mxu0 0.0
    %1964 = vmatpush1.msra.mxu0 %v1070
    %1965 = vmatprep.subr.mxu0 0.0
    %1966 = vmatpush1.msra.mxu0 %v1069
    %1967 = vmatprep.subr.mxu0 0.0
    %1968 = vmatpush1.msra.mxu0 %v1068
    %1969 = vmatprep.subr.mxu0 0.0
    %1970 = vmatpush1.msra.mxu0 %v1067
    %1971 = vmatprep.subr.mxu0 0.0
    %1972 = vmatpush2.msra.mxu0 0.0
    %1973 = vmatprep.subr.mxu0 0.0
    %1974 = vmatpush2.msra.mxu0 0.0
    %1975 = vmatprep.subr.mxu0 0.0
    %1976 = vmatpush2.msra.mxu0 0.0
    %1977 = vmatprep.subr.mxu0 0.0
    %1978 = vmatpush2.msra.mxu0 0.0
    %1979 = vmatprep.subr.mxu0 0.0
    %1980 = vmatpush2.msra.mxu0 0.0
    %1981 = vmatprep.subr.mxu0 0.0
    %1982 = vmatpush2.msra.mxu0 0.0
    %1983 = vmatprep.subr.mxu0 0.0
    %1984 = vmatpush2.msra.mxu0 0.0
    %1985 = vmatprep.subr.mxu0 0.0
    %1986 = vmatpush2.msra.mxu0 0.0
    %1987 = vmatprep.subr.mxu0 0.0
    %1988 = vmatpush2.msra.mxu0 0.0
    %1989 = vmatprep.subr.mxu0 0.0
    %1990 = vmatpush2.msra.mxu0 0.0
    %1991 = vmatprep.subr.mxu0 0.0
    %1992 = vmatpush2.msra.mxu0 0.0
    %1993 = vmatprep.subr.mxu0 0.0
    %1994 = vmatpush2.msra.mxu0 0.0
    %1995 = vmatprep.subr.mxu0 0.0
    %1996 = vmatpush2.msra.mxu0 0.0
    %1997 = vmatprep.subr.mxu0 0.0
    %1998 = vmatpush2.msra.mxu0 0.0
    %1999 = vmatprep.subr.mxu0 0.0
    %2000 = vmatpush2.msra.mxu0 0.0
    %2001 = vmatprep.subr.mxu0 0.0
    %2002 = vmatpush2.msra.mxu0 0.0
    %2003 = vmatprep.mubr.f32.mxu0 0.0
    %2004 = vmatmul.mubr.f32.gmra.mxu0 %v1937
    %v2005 = vpop.f32.mrf.mxu0
    %v2006 = vadd.f32 0.0, %v2005
    %v2007 = vpop.f32.mrf.mxu0
    %2008 = vdwg.mxu0
    %v2009 = vadd.f32 %v1933, %v2006
    %v2010 = vxor.u32 %v2009, 2147483648
    %v2011 = vmul.f32 %v2010, 1.442695
    %v2012 = vpow.pop %v2011
    %v2013 = vadd.f32 %v2012, 1.0
    %v2014 = vrcp.pop %v2013
    %v2015 = vmul.f32 1.0, %v2014
    %v2016 = vmul.f32 %v2015, 2.0
    %v2017 = vsub.f32 %v2016, 1.0
    %v2018 = vmul.f32 %v2015, %v1926
    %2020 = vrot.lane.b32.xlu0 %v2017, 64
    %v2021 = vpop.permute.xlu0 %2020
    %v2023 = vmul.f32 %v2015, %v2021
    %2025 = vrot.lane.b32.xlu0 %v2023, 32
    %v2026 = vpop.permute.xlu0 %2025
    %v2028 = vadd.f32 %v2018, %v2026
    %v2029 = vtanh.pop %v2028
    %2031 = vrot.lane.b32.xlu0 %v2029, 64
    %v2032 = vpop.permute.xlu0 %2031
    %v2034 = vmul.f32 %v2015, %v2032
    %2036 = vrot.lane.b32.xlu0 %v2034, 32
    %v2037 = vpop.permute.xlu0 %2036
    %s2039 = scalar_lea.vmem [#allocation7], 8
    %2040 = vst.msk [vmem:[%s2039] sm:$0xff] %vm198, %v2037
    %2042 = vrot.lane.b32.xlu0 %v2028, 96
    %v2043 = vpop.permute.xlu0 %2042
    %s2045 = scalar_lea.vmem [#allocation8], 8
    %2046 = vst.msk [vmem:[%s2045] sm:$0xff] %vm198, %v2043
    %v2047 = vmax.f32 %v2034, 0.0
    %v2048 = vld [vmem:[%s2 + $0x2] sm:$0x1]
    %v2049 = vlaneseq
    %v2050 = vshrl.u32 %v2049, 7
    %v2051 = vsub.s32 0, %v2050
    %v2052 = vrot.slane %v2048, %v2051
    %2054 = vrot.lane.b32.xlu0 %v2052, 96
    %v2055 = vpop.permute.xlu0 %2054
    %v2057 = vmul.f32 %v2047, %v2055
    %2059 = vrot.lane.b32.xlu0 %v2057, 32
    %v2060 = vpop.permute.xlu0 %2059
    %v2062 = vsel %vm198, %v2060, 0.0
    %2063 = vadd.xlane.f32.xlu0 %v2062
    %v2064 = vpop.xlane.xlu0 %2063
    %v2065 = vadd.f32 %v2064, %v2052
    %2067 = vrot.lane.b32.xlu0 %v2065, 96
    %v2068 = vpop.permute.xlu0 %2067
    %vm2070 = vcmask 7168
    %2071 = vst.msk [vmem:[%s5] sm:$0xff] %vm2070, %v2068
    // Predicated region
    $region26: #{lstmnet_forward.1} parent=1 // pred_check
      _
    $region27: #{lstmnet_forward.1} parent=1 // pred_check_branch
      %2073 = sbr.rel (0) target = $region29
    $region28: #{lstmnet_forward.1} parent=1 // pred_region
      _
    $region29: #{lstmnet_forward.1} parent=1 // pred_fallthru
      _
    // Predicated region
    $region30: #{lstmnet_forward.1} parent=1 // pred_check
      _
    $region31: #{lstmnet_forward.1} parent=1 // pred_check_branch
      %2075 = sbr.rel (0) target = $region33
    $region32: #{lstmnet_forward.1} parent=1 // pred_region
      %s2077 = ssub.s32 256, 256
      %2078 = vsyncadd [#allocation6], %s2077
      %s2079 = sshll.u32 [#allocation7], 4
      %s2080 = int_to_ptr.vmem [resolvable:$true] %s2079
      %2085 = dma.vmem_to_hbm [thread:$0]  %s2080, 256, %s6, [#allocation6], 128, 128, 8
    $region33: #{lstmnet_forward.1} parent=1 // pred_fallthru
      _
    // Predicated region
    $region34: #{lstmnet_forward.1} parent=1 // pred_check
      _
    $region35: #{lstmnet_forward.1} parent=1 // pred_check_branch
      %2087 = sbr.rel (0) target = $region37
    $region36: #{lstmnet_forward.1} parent=1 // pred_region
      %s2089 = ssub.s32 256, 256
      %2090 = vsyncadd [#allocation9], %s2089
      %s2091 = sshll.u32 [#allocation8], 4
      %s2092 = int_to_ptr.vmem [resolvable:$true] %s2091
      %2097 = dma.vmem_to_hbm [thread:$0]  %s2092, 256, %s7, [#allocation9], 128, 128, 8
    $region37: #{lstmnet_forward.1} parent=1 // pred_fallthru
      _
    // Predicated region
    $region38: #{lstmnet_forward.1} parent=1 // pred_check
      _
    $region39: #{lstmnet_forward.1} parent=1 // pred_check_branch
      %2099 = sbr.rel (0) target = $region41
    $region40: #{lstmnet_forward.1} parent=1 // pred_region
      _
    $region41: #{lstmnet_forward.1} parent=1 // pred_fallthru
      _
    // Predicated region
    $region42: #{lstmnet_forward.1} parent=1 // pred_check
      _
    $region43: #{lstmnet_forward.1} parent=1 // pred_check_branch
      %2101 = sbr.rel (0) target = $region45
    $region44: #{lstmnet_forward.1} parent=1 // pred_region
      %2102 = dma.done [#allocation6], 256
    $region45: #{lstmnet_forward.1} parent=1 // pred_fallthru
      _
    // Predicated region
    $region46: #{lstmnet_forward.1} parent=1 // pred_check
      _
    $region47: #{lstmnet_forward.1} parent=1 // pred_check_branch
      %2104 = sbr.rel (0) target = $region49
    $region48: #{lstmnet_forward.1} parent=1 // pred_region
      %2105 = dma.done [#allocation9], 256
    $region49: #{lstmnet_forward.1} parent=1 // pred_fallthru
      _
    %2106 = vsyncpa [#allocation5], 1
    %2107 = vsyncpa [#allocation6], 1
    %2108 = vsyncpa [#allocation9], 1

</llo_original>
